<compile_context>
chip_gen: v5e
topology: v5e:2x2
jax: 0.10.0
libtpu: 0.0.40
codegen_flags: <defaults>
</compile_context>

<pallas_src>
import functools

import jax
import jax.numpy as jnp
from jax import lax
from jax.experimental import pallas as pl
from jax.experimental.pallas import tpu as pltpu


def _round_up(x, m):
    return (x + m - 1) // m * m


# ----------------------------------------------------------------------------
# Fused encoder kernel (one graph node per grid step)
#   ResidualBlock(3C->3C): conv3x3 -> ReLU -> conv3x3 (+ identity)   x2
#   conv_block(3C->C):     conv3x3 -> InstanceNorm2d(eps=1e-5) -> ReLU
#
# Layouts inside the kernel (channels-first, flattened padded spatial on lanes):
#   x_ref    : (1, C3, S)   f32   S = (H+2)*(W+2), zero spatial border
#   ppad_ref : (C3p, S_ext) bf16  current activation; columns [PAD, PAD+S) hold
#                                 the padded map, everything else stays zero
#   slab_ref : (9*C3p, S)   bf16  im2col slab (9 lane-shifted copies of ppad)
#   w*       : (cout, 9*C3p) bf16 pre-packed weights;  b*: (cout, 1) f32
#   o_ref    : (1, C, S)    f32
# ----------------------------------------------------------------------------
def _encoder_kernel(mask_ref, x_ref,
                    w11, b11, w12, b12, w21, b21, w22, b22, w3, b3,
                    o_ref, ppad_ref, slab_ref, *,
                    C3, C3p, S, PAD, HW, deltas):
    mask = mask_ref[...]                               # (1, S) f32, 1 on interior

    # Zero once per grid step: keeps the halo columns, the padded channel rows
    # (C3..C3p) and the spatial zero border exactly zero for every conv.
    # (ppad is ~1-2 vregs, so this is negligible.)
    ppad_ref[...] = jnp.zeros_like(ppad_ref)

    def store_p(act_f32):
        """Write a border-zeroed (C3, S) f32 activation as the next conv input."""
        ppad_ref[:C3, PAD:PAD + S] = act_f32.astype(ppad_ref.dtype)

    def conv3x3(w_ref, b_ref):
        """3x3 / stride-1 / pad-1 conv of the activation held in ppad_ref.

        Builds the im2col slab with 9 aligned vreg-group copies (lane shifts of
        the padded map) and does a single (cout, 144) x (144, S) MXU matmul.
        Border columns of the result are meaningless and are masked by callers.
        """
        for t, d in enumerate(deltas):
            slab_ref[t * C3p:(t + 1) * C3p, :] = ppad_ref[:, PAD + d:PAD + d + S]
        y = jnp.dot(w_ref[...], slab_ref[...],
                    preferred_element_type=jnp.float32)     # (cout, S) f32
        return y + b_ref[...]                                # bias broadcast on lanes

    x0 = x_ref[0]                                            # (C3, S) f32, zero border
    store_p(x0)

    # Residual block 1: conv -> ReLU -> conv + identity
    h = jnp.maximum(conv3x3(w11, b11), 0.0)
    store_p(h * mask)
    r = conv3x3(w12, b12) + x0

    # Residual block 2
    store_p(r * mask)
    h = jnp.maximum(conv3x3(w21, b21), 0.0)
    store_p(h * mask)
    r = conv3x3(w22, b22) + r

    # conv_block: conv3x3 -> InstanceNorm2d(affine=False, eps=1e-5) -> ReLU
    store_p(r * mask)
    y = conv3x3(w3, b3)                                      # (C, S) f32
    inv_hw = 1.0 / HW
    mean = jnp.sum(y * mask, axis=-1, keepdims=True) * inv_hw
    d = (y - mean) * mask                                    # border forced to 0
    var = jnp.sum(d * d, axis=-1, keepdims=True) * inv_hw    # two-pass (exact)
    yn = d * lax.rsqrt(var + 1e-5)
    o_ref[0] = jnp.maximum(yn, 0.0).astype(o_ref.dtype)


def _encoder_pallas(params, x_nchw):
    """x_nchw: (V, 3C, H, W) -> (V, C, H, W), one pallas_call with grid=(V,)."""
    V, C3, H, W = x_nchw.shape
    C = params["w_out"].shape[-1]
    Hp, Wp = H + 2, W + 2
    S = Hp * Wp                       # flattened padded spatial (on lanes)
    PAD = Wp + 1                      # max |tap shift| in the flat layout
    S_ext = S + 2 * PAD
    C3p = _round_up(C3, 16)           # bf16 sublane-packing granularity

    # Zero-pad the spatial border once and flatten (H+2, W+2) -> S.
    xp = jnp.pad(x_nchw, ((0, 0), (0, 0), (1, 1), (1, 1))).reshape(V, C3, S)

    # Interior mask over the flattened padded spatial axis.
    pos = jnp.arange(S, dtype=jnp.int32)
    hh, ww = pos // Wp, pos % Wp
    interior = (hh >= 1) & (hh <= H) & (ww >= 1) & (ww <= W)
    mask = interior.astype(x_nchw.dtype).reshape(1, S)

    # Tap t = kh*3+kw  <->  flat spatial shift delta_t.
    deltas = tuple((kh - 1) * Wp + (kw - 1) for kh in range(3) for kw in range(3))

    def pack_w(w):   # HWIO (3, 3, cin, cout) -> (cout, 9*C3p) bf16, K zero-padded
        cin, cout = w.shape[2], w.shape[3]
        wt = jnp.transpose(w, (3, 0, 1, 2)).reshape(cout, 9, cin)
        wt = jnp.pad(wt, ((0, 0), (0, 0), (0, C3p - cin)))
        return wt.reshape(cout, 9 * C3p).astype(jnp.bfloat16)

    def pack_b(b):   # (cout,) -> (cout, 1) f32
        return b.reshape(-1, 1).astype(jnp.float32)

    args = (
        mask, xp,
        pack_w(params["res1"]["w1"]), pack_b(params["res1"]["b1"]),
        pack_w(params["res1"]["w2"]), pack_b(params["res1"]["b2"]),
        pack_w(params["res2"]["w1"]), pack_b(params["res2"]["b1"]),
        pack_w(params["res2"]["w2"]), pack_b(params["res2"]["b2"]),
        pack_w(params["w_out"]), pack_b(params["b_out"]),
    )

    kern = functools.partial(
        _encoder_kernel, C3=C3, C3p=C3p, S=S, PAD=PAD, HW=H * W, deltas=deltas)

    in_specs = [
        pl.BlockSpec((1, S), lambda v: (0, 0)),            # interior mask (shared)
        pl.BlockSpec((1, C3, S), lambda v: (v, 0, 0)),     # per-node input block
    ]
    in_specs += [pl.BlockSpec(a.shape, lambda v: (0, 0)) for a in args[2:]]

    # TODO(synk): for very large H*W a spatially tiled path (two-pass instance
    # norm) would be needed; at typical CMP2D map sizes one node fits easily.
    out = pl.pallas_call(
        kern,
        out_shape=jax.ShapeDtypeStruct((V, C, S), x_nchw.dtype),
        grid=(V,),
        in_specs=in_specs,
        out_specs=pl.BlockSpec((1, C, S), lambda v: (v, 0, 0)),
        scratch_shapes=[
            pltpu.VMEM((C3p, S_ext), jnp.bfloat16),        # padded activation
            pltpu.VMEM((9 * C3p, S), jnp.bfloat16),        # im2col slab
        ],
        compiler_params=pltpu.CompilerParams(
            dimension_semantics=("parallel",),
            vmem_limit_bytes=32 * 1024 * 1024),
    )(*args)

    # Interior crop + NCHW view: cheap XLA glue on a tiny slab.
    return out.reshape(V, C, Hp, Wp)[:, :, 1:H + 1, 1:W + 1]


# ----------------------------------------------------------------------------
# CMP2D forward (pooling glue in plain JAX, matches the PyTorch scatter_add)
# ----------------------------------------------------------------------------
def _pool_and_concat(feats_nchw, edges):
    edges = edges.reshape(-1, 3)
    src = edges[:, 0].astype(jnp.int32)
    rel = edges[:, 1]
    dst = edges[:, 2].astype(jnp.int32)

    def pool(sel):
        # symmetric scatter-add over both directions of the selected edges,
        # exactly as in the reference (src->dst and dst->src).
        m = sel.astype(feats_nchw.dtype)[:, None, None, None]
        pooled = jnp.zeros_like(feats_nchw)
        pooled = pooled.at[dst].add(feats_nchw[src] * m)
        pooled = pooled.at[src].add(feats_nchw[dst] * m)
        return pooled

    pooled_pos = pool(rel > 0)
    pooled_neg = pool(rel < 0)
    return jnp.concatenate([feats_nchw, pooled_pos, pooled_neg], axis=1)


def cmp2d_forward(params, feats_nchw, edges):
    """feats_nchw: (V, C, H, W) float32; edges: (E, 3) int rows (src, rel, dst)."""
    enc_in = _pool_and_concat(feats_nchw, edges)       # (V, 3C, H, W), already NCHW
    return _encoder_pallas(params, enc_in)             # (V, C, H, W)


# ----------------------------------------------------------------------------
# Pure-JAX reference (same bf16-matmul / f32-postop recipe) for self-check
# ----------------------------------------------------------------------------
def _encoder_reference(params, x_nhwc, *, compute_dtype=jnp.bfloat16):
    def conv(x, w, b):
        y = lax.conv_general_dilated(
            x.astype(compute_dtype), w.astype(compute_dtype),
            window_strides=(1, 1), padding=((1, 1), (1, 1)),
            dimension_numbers=("NHWC", "HWIO", "NHWC"),
            preferred_element_type=jnp.float32)
        return y + b.astype(jnp.float32)

    def resblock(x, p):
        h = jnp.maximum(conv(x, p["w1"], p["b1"]), 0.0)
        return conv(h, p["w2"], p["b2"]) + x

    x = x_nhwc.astype(jnp.float32)
    x = resblock(x, params["res1"])
    x = resblock(x, params["res2"])
    y = conv(x, params["w_out"], params["b_out"])
    mean = jnp.mean(y, axis=(1, 2), keepdims=True)
    var = jnp.mean((y - mean) ** 2, axis=(1, 2), keepdims=True)
    y = (y - mean) * lax.rsqrt(var + 1e-5)
    return jnp.maximum(y, 0.0)


def cmp2d_reference(params, feats_nchw, edges):
    enc_in = _pool_and_concat(feats_nchw, edges)
    x = jnp.transpose(enc_in, (0, 2, 3, 1))            # NCHW -> NHWC
    y = _encoder_reference(params, x)
    return jnp.transpose(y, (0, 3, 1, 2))


# ----------------------------------------------------------------------------
# Deterministic parameter init (shapes from CMP2D.__init__ with in_channels=C)
# TODO(synk): ResidualBlock source is not in the reference file; assumed
# conv3x3 -> ReLU -> conv3x3 + identity skip (same-channel form).
# ----------------------------------------------------------------------------
def init_params(key, C):
    C3 = 3 * C

    def conv_p(k, cin, cout):
        kw_, kb_ = jax.random.split(k)
        fan_in = float(cin * 9)
        w = jax.random.normal(kw_, (3, 3, cin, cout), jnp.float32) / jnp.sqrt(fan_in)
        b = 0.01 * jax.random.normal(kb_, (cout,), jnp.float32)
        return w, b

    k = jax.random.split(key, 5)
    r1w1, r1b1 = conv_p(k[0], C3, C3)
    r1w2, r1b2 = conv_p(k[1], C3, C3)
    r2w1, r2b1 = conv_p(k[2], C3, C3)
    r2w2, r2b2 = conv_p(k[3], C3, C3)
    wo, bo = conv_p(k[4], C3, C)
    return {
        "res1": {"w1": r1w1, "b1": r1b1, "w2": r1w2, "b2": r1b2},
        "res2": {"w1": r2w1, "b1": r2b1, "w2": r2w2, "b2": r2b2},
        "w_out": wo, "b_out": bo,
    }


if __name__ == "__main__":
    key = jax.random.PRNGKey(0)
    C, V, H = 4, 4, 8                      # in_channels=4, 4 graph nodes, 8x8 maps
    k_feats, k_params = jax.random.split(key)

    feats = jax.random.normal(k_feats, (V, C, H, H), jnp.float32)   # (V, C, H, W)
    edges = jnp.array(
        [[0, 1, 1],
         [1, -1, 2],
         [2, 1, 3],
         [0, -1, 3],
         [1, 1, 3],
         [0, 1, 2]], dtype=jnp.int32)                               # (E, 3)

    params = init_params(k_params, C)

    out = jax.jit(cmp2d_forward)(params, feats, edges)
    out = jax.block_until_ready(out)
    ref = jax.block_until_ready(jax.jit(cmp2d_reference)(params, feats, edges))

    assert out.shape == (V, C, H, H), out.shape
    assert jnp.all(jnp.isfinite(out))
    assert jnp.allclose(out, ref, atol=2e-2, rtol=2e-2), \
        float(jnp.max(jnp.abs(out - ref)))
    print("KERNEL_OK")
</pallas_src>

<mosaic_0001>
module attributes {stable_mosaic.version = 11 : i64} {
  func.func @_encoder_kernel(%arg0: i32, %arg1: memref<1x100xf32, #tpu.memory_space<vmem>>, %arg2: memref<1x12x100xf32, #tpu.memory_space<vmem>>, %arg3: memref<12x144xbf16, #tpu.memory_space<vmem>>, %arg4: memref<12x1xf32, #tpu.memory_space<vmem>>, %arg5: memref<12x144xbf16, #tpu.memory_space<vmem>>, %arg6: memref<12x1xf32, #tpu.memory_space<vmem>>, %arg7: memref<12x144xbf16, #tpu.memory_space<vmem>>, %arg8: memref<12x1xf32, #tpu.memory_space<vmem>>, %arg9: memref<12x144xbf16, #tpu.memory_space<vmem>>, %arg10: memref<12x1xf32, #tpu.memory_space<vmem>>, %arg11: memref<4x144xbf16, #tpu.memory_space<vmem>>, %arg12: memref<4x1xf32, #tpu.memory_space<vmem>>, %arg13: memref<1x4x100xf32, #tpu.memory_space<vmem>>, %arg14: memref<16x122xbf16, #tpu.memory_space<vmem>>, %arg15: memref<144x100xbf16, #tpu.memory_space<vmem>>) attributes {dimension_semantics = [#tpu.dimension_semantics<parallel>], iteration_bounds = array<i64: 4>, scalar_prefetch = 0 : i64, scratch_operands = 2 : i64, tpu.core_type = #tpu.core_type<tc>, window_params = [{pipeline_mode = #tpu.pipeline_mode<synchronous>, transform_indices = @transform_0, window_bounds = array<i64: 1, 100>}, {transform_indices = @transform_1, window_bounds = array<i64: 1, 12, 100>}, {pipeline_mode = #tpu.pipeline_mode<synchronous>, transform_indices = @transform_2, window_bounds = array<i64: 12, 144>}, {pipeline_mode = #tpu.pipeline_mode<synchronous>, transform_indices = @transform_3, window_bounds = array<i64: 12, 1>}, {pipeline_mode = #tpu.pipeline_mode<synchronous>, transform_indices = @transform_4, window_bounds = array<i64: 12, 144>}, {pipeline_mode = #tpu.pipeline_mode<synchronous>, transform_indices = @transform_5, window_bounds = array<i64: 12, 1>}, {pipeline_mode = #tpu.pipeline_mode<synchronous>, transform_indices = @transform_6, window_bounds = array<i64: 12, 144>}, {pipeline_mode = #tpu.pipeline_mode<synchronous>, transform_indices = @transform_7, window_bounds = array<i64: 12, 1>}, {pipeline_mode = #tpu.pipeline_mode<synchronous>, transform_indices = @transform_8, window_bounds = array<i64: 12, 144>}, {pipeline_mode = #tpu.pipeline_mode<synchronous>, transform_indices = @transform_9, window_bounds = array<i64: 12, 1>}, {pipeline_mode = #tpu.pipeline_mode<synchronous>, transform_indices = @transform_10, window_bounds = array<i64: 4, 144>}, {pipeline_mode = #tpu.pipeline_mode<synchronous>, transform_indices = @transform_11, window_bounds = array<i64: 4, 1>}, {transform_indices = @transform_12, window_bounds = array<i64: 1, 4, 100>}]} {
    %c0 = arith.constant 0 : index
    %c0_0 = arith.constant 0 : index
    %0 = vector.load %arg1[%c0, %c0_0] : memref<1x100xf32, #tpu.memory_space<vmem>>, vector<1x100xf32>
    %cst = arith.constant 0.000000e+00 : bf16
    %1 = vector.broadcast %cst : bf16 to vector<16x122xbf16>
    %c0_1 = arith.constant 0 : index
    %c0_2 = arith.constant 0 : index
    %2 = vector.load %arg14[%c0_1, %c0_2] : memref<16x122xbf16, #tpu.memory_space<vmem>>, vector<16x122xbf16>
    tpu.vector_store %arg14[%c0_1, %c0_2], %1 {strides = array<i32>} : memref<16x122xbf16, #tpu.memory_space<vmem>>, vector<16x122xbf16>,
    %c0_3 = arith.constant 0 : index
    %c0_4 = arith.constant 0 : index
    %c0_5 = arith.constant 0 : index
    %3 = vector.load %arg2[%c0_3, %c0_4, %c0_5] : memref<1x12x100xf32, #tpu.memory_space<vmem>>, vector<1x12x100xf32>
    %4 = vector.shape_cast %3 : vector<1x12x100xf32> to vector<12x100xf32>
    %5 = arith.truncf %4 : vector<12x100xf32> to vector<12x100xbf16>
    %c0_6 = arith.constant 0 : index
    %c11 = arith.constant 11 : index
    %6 = vector.load %arg14[%c0_6, %c11] : memref<16x122xbf16, #tpu.memory_space<vmem>>, vector<12x100xbf16>
    tpu.vector_store %arg14[%c0_6, %c11], %5 {strides = array<i32>} : memref<16x122xbf16, #tpu.memory_space<vmem>>, vector<12x100xbf16>,
    %c0_7 = arith.constant 0 : index
    %c0_8 = arith.constant 0 : index
    %7 = vector.load %arg14[%c0_7, %c0_8] : memref<16x122xbf16, #tpu.memory_space<vmem>>, vector<16x100xbf16>
    %c0_9 = arith.constant 0 : index
    %c0_10 = arith.constant 0 : index
    %8 = vector.load %arg15[%c0_9, %c0_10] : memref<144x100xbf16, #tpu.memory_space<vmem>>, vector<16x100xbf16>
    tpu.vector_store %arg15[%c0_9, %c0_10], %7 {strides = array<i32>} : memref<144x100xbf16, #tpu.memory_space<vmem>>, vector<16x100xbf16>,
    %c0_11 = arith.constant 0 : index
    %c1 = arith.constant 1 : index
    %9 = vector.load %arg14[%c0_11, %c1] : memref<16x122xbf16, #tpu.memory_space<vmem>>, vector<16x100xbf16>
    %c16 = arith.constant 16 : index
    %c0_12 = arith.constant 0 : index
    %10 = vector.load %arg15[%c16, %c0_12] : memref<144x100xbf16, #tpu.memory_space<vmem>>, vector<16x100xbf16>
    tpu.vector_store %arg15[%c16, %c0_12], %9 {strides = array<i32>} : memref<144x100xbf16, #tpu.memory_space<vmem>>, vector<16x100xbf16>,
    %c0_13 = arith.constant 0 : index
    %c2 = arith.constant 2 : index
    %11 = vector.load %arg14[%c0_13, %c2] : memref<16x122xbf16, #tpu.memory_space<vmem>>, vector<16x100xbf16>
    %c32 = arith.constant 32 : index
    %c0_14 = arith.constant 0 : index
    %12 = vector.load %arg15[%c32, %c0_14] : memref<144x100xbf16, #tpu.memory_space<vmem>>, vector<16x100xbf16>
    tpu.vector_store %arg15[%c32, %c0_14], %11 {strides = array<i32>} : memref<144x100xbf16, #tpu.memory_space<vmem>>, vector<16x100xbf16>,
    %c0_15 = arith.constant 0 : index
    %c10 = arith.constant 10 : index
    %13 = vector.load %arg14[%c0_15, %c10] : memref<16x122xbf16, #tpu.memory_space<vmem>>, vector<16x100xbf16>
    %c48 = arith.constant 48 : index
    %c0_16 = arith.constant 0 : index
    %14 = vector.load %arg15[%c48, %c0_16] : memref<144x100xbf16, #tpu.memory_space<vmem>>, vector<16x100xbf16>
    tpu.vector_store %arg15[%c48, %c0_16], %13 {strides = array<i32>} : memref<144x100xbf16, #tpu.memory_space<vmem>>, vector<16x100xbf16>,
    %c0_17 = arith.constant 0 : index
    %c11_18 = arith.constant 11 : index
    %15 = vector.load %arg14[%c0_17, %c11_18] : memref<16x122xbf16, #tpu.memory_space<vmem>>, vector<16x100xbf16>
    %c64 = arith.constant 64 : index
    %c0_19 = arith.constant 0 : index
    %16 = vector.load %arg15[%c64, %c0_19] : memref<144x100xbf16, #tpu.memory_space<vmem>>, vector<16x100xbf16>
    tpu.vector_store %arg15[%c64, %c0_19], %15 {strides = array<i32>} : memref<144x100xbf16, #tpu.memory_space<vmem>>, vector<16x100xbf16>,
    %c0_20 = arith.constant 0 : index
    %c12 = arith.constant 12 : index
    %17 = vector.load %arg14[%c0_20, %c12] : memref<16x122xbf16, #tpu.memory_space<vmem>>, vector<16x100xbf16>
    %c80 = arith.constant 80 : index
    %c0_21 = arith.constant 0 : index
    %18 = vector.load %arg15[%c80, %c0_21] : memref<144x100xbf16, #tpu.memory_space<vmem>>, vector<16x100xbf16>
    tpu.vector_store %arg15[%c80, %c0_21], %17 {strides = array<i32>} : memref<144x100xbf16, #tpu.memory_space<vmem>>, vector<16x100xbf16>,
    %c0_22 = arith.constant 0 : index
    %c20 = arith.constant 20 : index
    %19 = vector.load %arg14[%c0_22, %c20] : memref<16x122xbf16, #tpu.memory_space<vmem>>, vector<16x100xbf16>
    %c96 = arith.constant 96 : index
    %c0_23 = arith.constant 0 : index
    %20 = vector.load %arg15[%c96, %c0_23] : memref<144x100xbf16, #tpu.memory_space<vmem>>, vector<16x100xbf16>
    tpu.vector_store %arg15[%c96, %c0_23], %19 {strides = array<i32>} : memref<144x100xbf16, #tpu.memory_space<vmem>>, vector<16x100xbf16>,
    %c0_24 = arith.constant 0 : index
    %c21 = arith.constant 21 : index
    %21 = vector.load %arg14[%c0_24, %c21] : memref<16x122xbf16, #tpu.memory_space<vmem>>, vector<16x100xbf16>
    %c112 = arith.constant 112 : index
    %c0_25 = arith.constant 0 : index
    %22 = vector.load %arg15[%c112, %c0_25] : memref<144x100xbf16, #tpu.memory_space<vmem>>, vector<16x100xbf16>
    tpu.vector_store %arg15[%c112, %c0_25], %21 {strides = array<i32>} : memref<144x100xbf16, #tpu.memory_space<vmem>>, vector<16x100xbf16>,
    %c0_26 = arith.constant 0 : index
    %c22 = arith.constant 22 : index
    %23 = vector.load %arg14[%c0_26, %c22] : memref<16x122xbf16, #tpu.memory_space<vmem>>, vector<16x100xbf16>
    %c128 = arith.constant 128 : index
    %c0_27 = arith.constant 0 : index
    %24 = vector.load %arg15[%c128, %c0_27] : memref<144x100xbf16, #tpu.memory_space<vmem>>, vector<16x100xbf16>
    tpu.vector_store %arg15[%c128, %c0_27], %23 {strides = array<i32>} : memref<144x100xbf16, #tpu.memory_space<vmem>>, vector<16x100xbf16>,
    %c0_28 = arith.constant 0 : index
    %c0_29 = arith.constant 0 : index
    %25 = vector.load %arg3[%c0_28, %c0_29] : memref<12x144xbf16, #tpu.memory_space<vmem>>, vector<12x144xbf16>
    %c0_30 = arith.constant 0 : index
    %c0_31 = arith.constant 0 : index
    %26 = vector.load %arg15[%c0_30, %c0_31] : memref<144x100xbf16, #tpu.memory_space<vmem>>, vector<144x100xbf16>
    %cst_32 = arith.constant dense<0.000000e+00> : vector<12x100xf32>
    %27 = tpu.matmul %25, %26, %cst_32 {dimension_numbers = #tpu.dot_dimension_numbers<[1], [0], [0], [1], [0, 0, 1, 1], [], []>} : vector<12x144xbf16>, vector<144x100xbf16>, vector<12x100xf32> -> vector<12x100xf32>
    %c0_33 = arith.constant 0 : index
    %c0_34 = arith.constant 0 : index
    %28 = vector.load %arg4[%c0_33, %c0_34] : memref<12x1xf32, #tpu.memory_space<vmem>>, vector<12x1xf32>
    %29 = vector.broadcast %28 : vector<12x1xf32> to vector<12x100xf32>
    %30 = arith.addf %27, %29 : vector<12x100xf32>
    %cst_35 = arith.constant 0.000000e+00 : f32
    %31 = vector.broadcast %cst_35 : f32 to vector<12x100xf32>
    %32 = arith.maximumf %30, %31 : vector<12x100xf32>
    %33 = vector.broadcast %0 : vector<1x100xf32> to vector<12x100xf32>
    %34 = arith.mulf %32, %33 : vector<12x100xf32>
    %35 = arith.truncf %34 : vector<12x100xf32> to vector<12x100xbf16>
    %c0_36 = arith.constant 0 : index
    %c11_37 = arith.constant 11 : index
    %36 = vector.load %arg14[%c0_36, %c11_37] : memref<16x122xbf16, #tpu.memory_space<vmem>>, vector<12x100xbf16>
    tpu.vector_store %arg14[%c0_36, %c11_37], %35 {strides = array<i32>} : memref<16x122xbf16, #tpu.memory_space<vmem>>, vector<12x100xbf16>,
    %c0_38 = arith.constant 0 : index
    %c0_39 = arith.constant 0 : index
    %37 = vector.load %arg14[%c0_38, %c0_39] : memref<16x122xbf16, #tpu.memory_space<vmem>>, vector<16x100xbf16>
    %c0_40 = arith.constant 0 : index
    %c0_41 = arith.constant 0 : index
    %38 = vector.load %arg15[%c0_40, %c0_41] : memref<144x100xbf16, #tpu.memory_space<vmem>>, vector<16x100xbf16>
    tpu.vector_store %arg15[%c0_40, %c0_41], %37 {strides = array<i32>} : memref<144x100xbf16, #tpu.memory_space<vmem>>, vector<16x100xbf16>,
    %c0_42 = arith.constant 0 : index
    %c1_43 = arith.constant 1 : index
    %39 = vector.load %arg14[%c0_42, %c1_43] : memref<16x122xbf16, #tpu.memory_space<vmem>>, vector<16x100xbf16>
    %c16_44 = arith.constant 16 : index
    %c0_45 = arith.constant 0 : index
    %40 = vector.load %arg15[%c16_44, %c0_45] : memref<144x100xbf16, #tpu.memory_space<vmem>>, vector<16x100xbf16>
    tpu.vector_store %arg15[%c16_44, %c0_45], %39 {strides = array<i32>} : memref<144x100xbf16, #tpu.memory_space<vmem>>, vector<16x100xbf16>,
    %c0_46 = arith.constant 0 : index
    %c2_47 = arith.constant 2 : index
    %41 = vector.load %arg14[%c0_46, %c2_47] : memref<16x122xbf16, #tpu.memory_space<vmem>>, vector<16x100xbf16>
    %c32_48 = arith.constant 32 : index
    %c0_49 = arith.constant 0 : index
    %42 = vector.load %arg15[%c32_48, %c0_49] : memref<144x100xbf16, #tpu.memory_space<vmem>>, vector<16x100xbf16>
    tpu.vector_store %arg15[%c32_48, %c0_49], %41 {strides = array<i32>} : memref<144x100xbf16, #tpu.memory_space<vmem>>, vector<16x100xbf16>,
    %c0_50 = arith.constant 0 : index
    %c10_51 = arith.constant 10 : index
    %43 = vector.load %arg14[%c0_50, %c10_51] : memref<16x122xbf16, #tpu.memory_space<vmem>>, vector<16x100xbf16>
    %c48_52 = arith.constant 48 : index
    %c0_53 = arith.constant 0 : index
    %44 = vector.load %arg15[%c48_52, %c0_53] : memref<144x100xbf16, #tpu.memory_space<vmem>>, vector<16x100xbf16>
    tpu.vector_store %arg15[%c48_52, %c0_53], %43 {strides = array<i32>} : memref<144x100xbf16, #tpu.memory_space<vmem>>, vector<16x100xbf16>,
    %c0_54 = arith.constant 0 : index
    %c11_55 = arith.constant 11 : index
    %45 = vector.load %arg14[%c0_54, %c11_55] : memref<16x122xbf16, #tpu.memory_space<vmem>>, vector<16x100xbf16>
    %c64_56 = arith.constant 64 : index
    %c0_57 = arith.constant 0 : index
    %46 = vector.load %arg15[%c64_56, %c0_57] : memref<144x100xbf16, #tpu.memory_space<vmem>>, vector<16x100xbf16>
    tpu.vector_store %arg15[%c64_56, %c0_57], %45 {strides = array<i32>} : memref<144x100xbf16, #tpu.memory_space<vmem>>, vector<16x100xbf16>,
    %c0_58 = arith.constant 0 : index
    %c12_59 = arith.constant 12 : index
    %47 = vector.load %arg14[%c0_58, %c12_59] : memref<16x122xbf16, #tpu.memory_space<vmem>>, vector<16x100xbf16>
    %c80_60 = arith.constant 80 : index
    %c0_61 = arith.constant 0 : index
    %48 = vector.load %arg15[%c80_60, %c0_61] : memref<144x100xbf16, #tpu.memory_space<vmem>>, vector<16x100xbf16>
    tpu.vector_store %arg15[%c80_60, %c0_61], %47 {strides = array<i32>} : memref<144x100xbf16, #tpu.memory_space<vmem>>, vector<16x100xbf16>,
    %c0_62 = arith.constant 0 : index
    %c20_63 = arith.constant 20 : index
    %49 = vector.load %arg14[%c0_62, %c20_63] : memref<16x122xbf16, #tpu.memory_space<vmem>>, vector<16x100xbf16>
    %c96_64 = arith.constant 96 : index
    %c0_65 = arith.constant 0 : index
    %50 = vector.load %arg15[%c96_64, %c0_65] : memref<144x100xbf16, #tpu.memory_space<vmem>>, vector<16x100xbf16>
    tpu.vector_store %arg15[%c96_64, %c0_65], %49 {strides = array<i32>} : memref<144x100xbf16, #tpu.memory_space<vmem>>, vector<16x100xbf16>,
    %c0_66 = arith.constant 0 : index
    %c21_67 = arith.constant 21 : index
    %51 = vector.load %arg14[%c0_66, %c21_67] : memref<16x122xbf16, #tpu.memory_space<vmem>>, vector<16x100xbf16>
    %c112_68 = arith.constant 112 : index
    %c0_69 = arith.constant 0 : index
    %52 = vector.load %arg15[%c112_68, %c0_69] : memref<144x100xbf16, #tpu.memory_space<vmem>>, vector<16x100xbf16>
    tpu.vector_store %arg15[%c112_68, %c0_69], %51 {strides = array<i32>} : memref<144x100xbf16, #tpu.memory_space<vmem>>, vector<16x100xbf16>,
    %c0_70 = arith.constant 0 : index
    %c22_71 = arith.constant 22 : index
    %53 = vector.load %arg14[%c0_70, %c22_71] : memref<16x122xbf16, #tpu.memory_space<vmem>>, vector<16x100xbf16>
    %c128_72 = arith.constant 128 : index
    %c0_73 = arith.constant 0 : index
    %54 = vector.load %arg15[%c128_72, %c0_73] : memref<144x100xbf16, #tpu.memory_space<vmem>>, vector<16x100xbf16>
    tpu.vector_store %arg15[%c128_72, %c0_73], %53 {strides = array<i32>} : memref<144x100xbf16, #tpu.memory_space<vmem>>, vector<16x100xbf16>,
    %c0_74 = arith.constant 0 : index
    %c0_75 = arith.constant 0 : index
    %55 = vector.load %arg5[%c0_74, %c0_75] : memref<12x144xbf16, #tpu.memory_space<vmem>>, vector<12x144xbf16>
    %c0_76 = arith.constant 0 : index
    %c0_77 = arith.constant 0 : index
    %56 = vector.load %arg15[%c0_76, %c0_77] : memref<144x100xbf16, #tpu.memory_space<vmem>>, vector<144x100xbf16>
    %cst_78 = arith.constant dense<0.000000e+00> : vector<12x100xf32>
    %57 = tpu.matmul %55, %56, %cst_78 {dimension_numbers = #tpu.dot_dimension_numbers<[1], [0], [0], [1], [0, 0, 1, 1], [], []>} : vector<12x144xbf16>, vector<144x100xbf16>, vector<12x100xf32> -> vector<12x100xf32>
    %c0_79 = arith.constant 0 : index
    %c0_80 = arith.constant 0 : index
    %58 = vector.load %arg6[%c0_79, %c0_80] : memref<12x1xf32, #tpu.memory_space<vmem>>, vector<12x1xf32>
    %59 = vector.broadcast %58 : vector<12x1xf32> to vector<12x100xf32>
    %60 = arith.addf %57, %59 : vector<12x100xf32>
    %61 = arith.addf %60, %4 : vector<12x100xf32>
    %62 = vector.broadcast %0 : vector<1x100xf32> to vector<12x100xf32>
    %63 = arith.mulf %61, %62 : vector<12x100xf32>
    %64 = arith.truncf %63 : vector<12x100xf32> to vector<12x100xbf16>
    %c0_81 = arith.constant 0 : index
    %c11_82 = arith.constant 11 : index
    %65 = vector.load %arg14[%c0_81, %c11_82] : memref<16x122xbf16, #tpu.memory_space<vmem>>, vector<12x100xbf16>
    tpu.vector_store %arg14[%c0_81, %c11_82], %64 {strides = array<i32>} : memref<16x122xbf16, #tpu.memory_space<vmem>>, vector<12x100xbf16>,
    %c0_83 = arith.constant 0 : index
    %c0_84 = arith.constant 0 : index
    %66 = vector.load %arg14[%c0_83, %c0_84] : memref<16x122xbf16, #tpu.memory_space<vmem>>, vector<16x100xbf16>
    %c0_85 = arith.constant 0 : index
    %c0_86 = arith.constant 0 : index
    %67 = vector.load %arg15[%c0_85, %c0_86] : memref<144x100xbf16, #tpu.memory_space<vmem>>, vector<16x100xbf16>
    tpu.vector_store %arg15[%c0_85, %c0_86], %66 {strides = array<i32>} : memref<144x100xbf16, #tpu.memory_space<vmem>>, vector<16x100xbf16>,
    %c0_87 = arith.constant 0 : index
    %c1_88 = arith.constant 1 : index
    %68 = vector.load %arg14[%c0_87, %c1_88] : memref<16x122xbf16, #tpu.memory_space<vmem>>, vector<16x100xbf16>
    %c16_89 = arith.constant 16 : index
    %c0_90 = arith.constant 0 : index
    %69 = vector.load %arg15[%c16_89, %c0_90] : memref<144x100xbf16, #tpu.memory_space<vmem>>, vector<16x100xbf16>
    tpu.vector_store %arg15[%c16_89, %c0_90], %68 {strides = array<i32>} : memref<144x100xbf16, #tpu.memory_space<vmem>>, vector<16x100xbf16>,
    %c0_91 = arith.constant 0 : index
    %c2_92 = arith.constant 2 : index
    %70 = vector.load %arg14[%c0_91, %c2_92] : memref<16x122xbf16, #tpu.memory_space<vmem>>, vector<16x100xbf16>
    %c32_93 = arith.constant 32 : index
    %c0_94 = arith.constant 0 : index
    %71 = vector.load %arg15[%c32_93, %c0_94] : memref<144x100xbf16, #tpu.memory_space<vmem>>, vector<16x100xbf16>
    tpu.vector_store %arg15[%c32_93, %c0_94], %70 {strides = array<i32>} : memref<144x100xbf16, #tpu.memory_space<vmem>>, vector<16x100xbf16>,
    %c0_95 = arith.constant 0 : index
    %c10_96 = arith.constant 10 : index
    %72 = vector.load %arg14[%c0_95, %c10_96] : memref<16x122xbf16, #tpu.memory_space<vmem>>, vector<16x100xbf16>
    %c48_97 = arith.constant 48 : index
    %c0_98 = arith.constant 0 : index
    %73 = vector.load %arg15[%c48_97, %c0_98] : memref<144x100xbf16, #tpu.memory_space<vmem>>, vector<16x100xbf16>
    tpu.vector_store %arg15[%c48_97, %c0_98], %72 {strides = array<i32>} : memref<144x100xbf16, #tpu.memory_space<vmem>>, vector<16x100xbf16>,
    %c0_99 = arith.constant 0 : index
    %c11_100 = arith.constant 11 : index
    %74 = vector.load %arg14[%c0_99, %c11_100] : memref<16x122xbf16, #tpu.memory_space<vmem>>, vector<16x100xbf16>
    %c64_101 = arith.constant 64 : index
    %c0_102 = arith.constant 0 : index
    %75 = vector.load %arg15[%c64_101, %c0_102] : memref<144x100xbf16, #tpu.memory_space<vmem>>, vector<16x100xbf16>
    tpu.vector_store %arg15[%c64_101, %c0_102], %74 {strides = array<i32>} : memref<144x100xbf16, #tpu.memory_space<vmem>>, vector<16x100xbf16>,
    %c0_103 = arith.constant 0 : index
    %c12_104 = arith.constant 12 : index
    %76 = vector.load %arg14[%c0_103, %c12_104] : memref<16x122xbf16, #tpu.memory_space<vmem>>, vector<16x100xbf16>
    %c80_105 = arith.constant 80 : index
    %c0_106 = arith.constant 0 : index
    %77 = vector.load %arg15[%c80_105, %c0_106] : memref<144x100xbf16, #tpu.memory_space<vmem>>, vector<16x100xbf16>
    tpu.vector_store %arg15[%c80_105, %c0_106], %76 {strides = array<i32>} : memref<144x100xbf16, #tpu.memory_space<vmem>>, vector<16x100xbf16>,
    %c0_107 = arith.constant 0 : index
    %c20_108 = arith.constant 20 : index
    %78 = vector.load %arg14[%c0_107, %c20_108] : memref<16x122xbf16, #tpu.memory_space<vmem>>, vector<16x100xbf16>
    %c96_109 = arith.constant 96 : index
    %c0_110 = arith.constant 0 : index
    %79 = vector.load %arg15[%c96_109, %c0_110] : memref<144x100xbf16, #tpu.memory_space<vmem>>, vector<16x100xbf16>
    tpu.vector_store %arg15[%c96_109, %c0_110], %78 {strides = array<i32>} : memref<144x100xbf16, #tpu.memory_space<vmem>>, vector<16x100xbf16>,
    %c0_111 = arith.constant 0 : index
    %c21_112 = arith.constant 21 : index
    %80 = vector.load %arg14[%c0_111, %c21_112] : memref<16x122xbf16, #tpu.memory_space<vmem>>, vector<16x100xbf16>
    %c112_113 = arith.constant 112 : index
    %c0_114 = arith.constant 0 : index
    %81 = vector.load %arg15[%c112_113, %c0_114] : memref<144x100xbf16, #tpu.memory_space<vmem>>, vector<16x100xbf16>
    tpu.vector_store %arg15[%c112_113, %c0_114], %80 {strides = array<i32>} : memref<144x100xbf16, #tpu.memory_space<vmem>>, vector<16x100xbf16>,
    %c0_115 = arith.constant 0 : index
    %c22_116 = arith.constant 22 : index
    %82 = vector.load %arg14[%c0_115, %c22_116] : memref<16x122xbf16, #tpu.memory_space<vmem>>, vector<16x100xbf16>
    %c128_117 = arith.constant 128 : index
    %c0_118 = arith.constant 0 : index
    %83 = vector.load %arg15[%c128_117, %c0_118] : memref<144x100xbf16, #tpu.memory_space<vmem>>, vector<16x100xbf16>
    tpu.vector_store %arg15[%c128_117, %c0_118], %82 {strides = array<i32>} : memref<144x100xbf16, #tpu.memory_space<vmem>>, vector<16x100xbf16>,
    %c0_119 = arith.constant 0 : index
    %c0_120 = arith.constant 0 : index
    %84 = vector.load %arg7[%c0_119, %c0_120] : memref<12x144xbf16, #tpu.memory_space<vmem>>, vector<12x144xbf16>
    %c0_121 = arith.constant 0 : index
    %c0_122 = arith.constant 0 : index
    %85 = vector.load %arg15[%c0_121, %c0_122] : memref<144x100xbf16, #tpu.memory_space<vmem>>, vector<144x100xbf16>
    %cst_123 = arith.constant dense<0.000000e+00> : vector<12x100xf32>
    %86 = tpu.matmul %84, %85, %cst_123 {dimension_numbers = #tpu.dot_dimension_numbers<[1], [0], [0], [1], [0, 0, 1, 1], [], []>} : vector<12x144xbf16>, vector<144x100xbf16>, vector<12x100xf32> -> vector<12x100xf32>
    %c0_124 = arith.constant 0 : index
    %c0_125 = arith.constant 0 : index
    %87 = vector.load %arg8[%c0_124, %c0_125] : memref<12x1xf32, #tpu.memory_space<vmem>>, vector<12x1xf32>
    %88 = vector.broadcast %87 : vector<12x1xf32> to vector<12x100xf32>
    %89 = arith.addf %86, %88 : vector<12x100xf32>
    %cst_126 = arith.constant 0.000000e+00 : f32
    %90 = vector.broadcast %cst_126 : f32 to vector<12x100xf32>
    %91 = arith.maximumf %89, %90 : vector<12x100xf32>
    %92 = vector.broadcast %0 : vector<1x100xf32> to vector<12x100xf32>
    %93 = arith.mulf %91, %92 : vector<12x100xf32>
    %94 = arith.truncf %93 : vector<12x100xf32> to vector<12x100xbf16>
    %c0_127 = arith.constant 0 : index
    %c11_128 = arith.constant 11 : index
    %95 = vector.load %arg14[%c0_127, %c11_128] : memref<16x122xbf16, #tpu.memory_space<vmem>>, vector<12x100xbf16>
    tpu.vector_store %arg14[%c0_127, %c11_128], %94 {strides = array<i32>} : memref<16x122xbf16, #tpu.memory_space<vmem>>, vector<12x100xbf16>,
    %c0_129 = arith.constant 0 : index
    %c0_130 = arith.constant 0 : index
    %96 = vector.load %arg14[%c0_129, %c0_130] : memref<16x122xbf16, #tpu.memory_space<vmem>>, vector<16x100xbf16>
    %c0_131 = arith.constant 0 : index
    %c0_132 = arith.constant 0 : index
    %97 = vector.load %arg15[%c0_131, %c0_132] : memref<144x100xbf16, #tpu.memory_space<vmem>>, vector<16x100xbf16>
    tpu.vector_store %arg15[%c0_131, %c0_132], %96 {strides = array<i32>} : memref<144x100xbf16, #tpu.memory_space<vmem>>, vector<16x100xbf16>,
    %c0_133 = arith.constant 0 : index
    %c1_134 = arith.constant 1 : index
    %98 = vector.load %arg14[%c0_133, %c1_134] : memref<16x122xbf16, #tpu.memory_space<vmem>>, vector<16x100xbf16>
    %c16_135 = arith.constant 16 : index
    %c0_136 = arith.constant 0 : index
    %99 = vector.load %arg15[%c16_135, %c0_136] : memref<144x100xbf16, #tpu.memory_space<vmem>>, vector<16x100xbf16>
    tpu.vector_store %arg15[%c16_135, %c0_136], %98 {strides = array<i32>} : memref<144x100xbf16, #tpu.memory_space<vmem>>, vector<16x100xbf16>,
    %c0_137 = arith.constant 0 : index
    %c2_138 = arith.constant 2 : index
    %100 = vector.load %arg14[%c0_137, %c2_138] : memref<16x122xbf16, #tpu.memory_space<vmem>>, vector<16x100xbf16>
    %c32_139 = arith.constant 32 : index
    %c0_140 = arith.constant 0 : index
    %101 = vector.load %arg15[%c32_139, %c0_140] : memref<144x100xbf16, #tpu.memory_space<vmem>>, vector<16x100xbf16>
    tpu.vector_store %arg15[%c32_139, %c0_140], %100 {strides = array<i32>} : memref<144x100xbf16, #tpu.memory_space<vmem>>, vector<16x100xbf16>,
    %c0_141 = arith.constant 0 : index
    %c10_142 = arith.constant 10 : index
    %102 = vector.load %arg14[%c0_141, %c10_142] : memref<16x122xbf16, #tpu.memory_space<vmem>>, vector<16x100xbf16>
    %c48_143 = arith.constant 48 : index
    %c0_144 = arith.constant 0 : index
    %103 = vector.load %arg15[%c48_143, %c0_144] : memref<144x100xbf16, #tpu.memory_space<vmem>>, vector<16x100xbf16>
    tpu.vector_store %arg15[%c48_143, %c0_144], %102 {strides = array<i32>} : memref<144x100xbf16, #tpu.memory_space<vmem>>, vector<16x100xbf16>,
    %c0_145 = arith.constant 0 : index
    %c11_146 = arith.constant 11 : index
    %104 = vector.load %arg14[%c0_145, %c11_146] : memref<16x122xbf16, #tpu.memory_space<vmem>>, vector<16x100xbf16>
    %c64_147 = arith.constant 64 : index
    %c0_148 = arith.constant 0 : index
    %105 = vector.load %arg15[%c64_147, %c0_148] : memref<144x100xbf16, #tpu.memory_space<vmem>>, vector<16x100xbf16>
    tpu.vector_store %arg15[%c64_147, %c0_148], %104 {strides = array<i32>} : memref<144x100xbf16, #tpu.memory_space<vmem>>, vector<16x100xbf16>,
    %c0_149 = arith.constant 0 : index
    %c12_150 = arith.constant 12 : index
    %106 = vector.load %arg14[%c0_149, %c12_150] : memref<16x122xbf16, #tpu.memory_space<vmem>>, vector<16x100xbf16>
    %c80_151 = arith.constant 80 : index
    %c0_152 = arith.constant 0 : index
    %107 = vector.load %arg15[%c80_151, %c0_152] : memref<144x100xbf16, #tpu.memory_space<vmem>>, vector<16x100xbf16>
    tpu.vector_store %arg15[%c80_151, %c0_152], %106 {strides = array<i32>} : memref<144x100xbf16, #tpu.memory_space<vmem>>, vector<16x100xbf16>,
    %c0_153 = arith.constant 0 : index
    %c20_154 = arith.constant 20 : index
    %108 = vector.load %arg14[%c0_153, %c20_154] : memref<16x122xbf16, #tpu.memory_space<vmem>>, vector<16x100xbf16>
    %c96_155 = arith.constant 96 : index
    %c0_156 = arith.constant 0 : index
    %109 = vector.load %arg15[%c96_155, %c0_156] : memref<144x100xbf16, #tpu.memory_space<vmem>>, vector<16x100xbf16>
    tpu.vector_store %arg15[%c96_155, %c0_156], %108 {strides = array<i32>} : memref<144x100xbf16, #tpu.memory_space<vmem>>, vector<16x100xbf16>,
    %c0_157 = arith.constant 0 : index
    %c21_158 = arith.constant 21 : index
    %110 = vector.load %arg14[%c0_157, %c21_158] : memref<16x122xbf16, #tpu.memory_space<vmem>>, vector<16x100xbf16>
    %c112_159 = arith.constant 112 : index
    %c0_160 = arith.constant 0 : index
    %111 = vector.load %arg15[%c112_159, %c0_160] : memref<144x100xbf16, #tpu.memory_space<vmem>>, vector<16x100xbf16>
    tpu.vector_store %arg15[%c112_159, %c0_160], %110 {strides = array<i32>} : memref<144x100xbf16, #tpu.memory_space<vmem>>, vector<16x100xbf16>,
    %c0_161 = arith.constant 0 : index
    %c22_162 = arith.constant 22 : index
    %112 = vector.load %arg14[%c0_161, %c22_162] : memref<16x122xbf16, #tpu.memory_space<vmem>>, vector<16x100xbf16>
    %c128_163 = arith.constant 128 : index
    %c0_164 = arith.constant 0 : index
    %113 = vector.load %arg15[%c128_163, %c0_164] : memref<144x100xbf16, #tpu.memory_space<vmem>>, vector<16x100xbf16>
    tpu.vector_store %arg15[%c128_163, %c0_164], %112 {strides = array<i32>} : memref<144x100xbf16, #tpu.memory_space<vmem>>, vector<16x100xbf16>,
    %c0_165 = arith.constant 0 : index
    %c0_166 = arith.constant 0 : index
    %114 = vector.load %arg9[%c0_165, %c0_166] : memref<12x144xbf16, #tpu.memory_space<vmem>>, vector<12x144xbf16>
    %c0_167 = arith.constant 0 : index
    %c0_168 = arith.constant 0 : index
    %115 = vector.load %arg15[%c0_167, %c0_168] : memref<144x100xbf16, #tpu.memory_space<vmem>>, vector<144x100xbf16>
    %cst_169 = arith.constant dense<0.000000e+00> : vector<12x100xf32>
    %116 = tpu.matmul %114, %115, %cst_169 {dimension_numbers = #tpu.dot_dimension_numbers<[1], [0], [0], [1], [0, 0, 1, 1], [], []>} : vector<12x144xbf16>, vector<144x100xbf16>, vector<12x100xf32> -> vector<12x100xf32>
    %c0_170 = arith.constant 0 : index
    %c0_171 = arith.constant 0 : index
    %117 = vector.load %arg10[%c0_170, %c0_171] : memref<12x1xf32, #tpu.memory_space<vmem>>, vector<12x1xf32>
    %118 = vector.broadcast %117 : vector<12x1xf32> to vector<12x100xf32>
    %119 = arith.addf %116, %118 : vector<12x100xf32>
    %120 = arith.addf %119, %61 : vector<12x100xf32>
    %121 = vector.broadcast %0 : vector<1x100xf32> to vector<12x100xf32>
    %122 = arith.mulf %120, %121 : vector<12x100xf32>
    %123 = arith.truncf %122 : vector<12x100xf32> to vector<12x100xbf16>
    %c0_172 = arith.constant 0 : index
    %c11_173 = arith.constant 11 : index
    %124 = vector.load %arg14[%c0_172, %c11_173] : memref<16x122xbf16, #tpu.memory_space<vmem>>, vector<12x100xbf16>
    tpu.vector_store %arg14[%c0_172, %c11_173], %123 {strides = array<i32>} : memref<16x122xbf16, #tpu.memory_space<vmem>>, vector<12x100xbf16>,
    %c0_174 = arith.constant 0 : index
    %c0_175 = arith.constant 0 : index
    %125 = vector.load %arg14[%c0_174, %c0_175] : memref<16x122xbf16, #tpu.memory_space<vmem>>, vector<16x100xbf16>
    %c0_176 = arith.constant 0 : index
    %c0_177 = arith.constant 0 : index
    %126 = vector.load %arg15[%c0_176, %c0_177] : memref<144x100xbf16, #tpu.memory_space<vmem>>, vector<16x100xbf16>
    tpu.vector_store %arg15[%c0_176, %c0_177], %125 {strides = array<i32>} : memref<144x100xbf16, #tpu.memory_space<vmem>>, vector<16x100xbf16>,
    %c0_178 = arith.constant 0 : index
    %c1_179 = arith.constant 1 : index
    %127 = vector.load %arg14[%c0_178, %c1_179] : memref<16x122xbf16, #tpu.memory_space<vmem>>, vector<16x100xbf16>
    %c16_180 = arith.constant 16 : index
    %c0_181 = arith.constant 0 : index
    %128 = vector.load %arg15[%c16_180, %c0_181] : memref<144x100xbf16, #tpu.memory_space<vmem>>, vector<16x100xbf16>
    tpu.vector_store %arg15[%c16_180, %c0_181], %127 {strides = array<i32>} : memref<144x100xbf16, #tpu.memory_space<vmem>>, vector<16x100xbf16>,
    %c0_182 = arith.constant 0 : index
    %c2_183 = arith.constant 2 : index
    %129 = vector.load %arg14[%c0_182, %c2_183] : memref<16x122xbf16, #tpu.memory_space<vmem>>, vector<16x100xbf16>
    %c32_184 = arith.constant 32 : index
    %c0_185 = arith.constant 0 : index
    %130 = vector.load %arg15[%c32_184, %c0_185] : memref<144x100xbf16, #tpu.memory_space<vmem>>, vector<16x100xbf16>
    tpu.vector_store %arg15[%c32_184, %c0_185], %129 {strides = array<i32>} : memref<144x100xbf16, #tpu.memory_space<vmem>>, vector<16x100xbf16>,
    %c0_186 = arith.constant 0 : index
    %c10_187 = arith.constant 10 : index
    %131 = vector.load %arg14[%c0_186, %c10_187] : memref<16x122xbf16, #tpu.memory_space<vmem>>, vector<16x100xbf16>
    %c48_188 = arith.constant 48 : index
    %c0_189 = arith.constant 0 : index
    %132 = vector.load %arg15[%c48_188, %c0_189] : memref<144x100xbf16, #tpu.memory_space<vmem>>, vector<16x100xbf16>
    tpu.vector_store %arg15[%c48_188, %c0_189], %131 {strides = array<i32>} : memref<144x100xbf16, #tpu.memory_space<vmem>>, vector<16x100xbf16>,
    %c0_190 = arith.constant 0 : index
    %c11_191 = arith.constant 11 : index
    %133 = vector.load %arg14[%c0_190, %c11_191] : memref<16x122xbf16, #tpu.memory_space<vmem>>, vector<16x100xbf16>
    %c64_192 = arith.constant 64 : index
    %c0_193 = arith.constant 0 : index
    %134 = vector.load %arg15[%c64_192, %c0_193] : memref<144x100xbf16, #tpu.memory_space<vmem>>, vector<16x100xbf16>
    tpu.vector_store %arg15[%c64_192, %c0_193], %133 {strides = array<i32>} : memref<144x100xbf16, #tpu.memory_space<vmem>>, vector<16x100xbf16>,
    %c0_194 = arith.constant 0 : index
    %c12_195 = arith.constant 12 : index
    %135 = vector.load %arg14[%c0_194, %c12_195] : memref<16x122xbf16, #tpu.memory_space<vmem>>, vector<16x100xbf16>
    %c80_196 = arith.constant 80 : index
    %c0_197 = arith.constant 0 : index
    %136 = vector.load %arg15[%c80_196, %c0_197] : memref<144x100xbf16, #tpu.memory_space<vmem>>, vector<16x100xbf16>
    tpu.vector_store %arg15[%c80_196, %c0_197], %135 {strides = array<i32>} : memref<144x100xbf16, #tpu.memory_space<vmem>>, vector<16x100xbf16>,
    %c0_198 = arith.constant 0 : index
    %c20_199 = arith.constant 20 : index
    %137 = vector.load %arg14[%c0_198, %c20_199] : memref<16x122xbf16, #tpu.memory_space<vmem>>, vector<16x100xbf16>
    %c96_200 = arith.constant 96 : index
    %c0_201 = arith.constant 0 : index
    %138 = vector.load %arg15[%c96_200, %c0_201] : memref<144x100xbf16, #tpu.memory_space<vmem>>, vector<16x100xbf16>
    tpu.vector_store %arg15[%c96_200, %c0_201], %137 {strides = array<i32>} : memref<144x100xbf16, #tpu.memory_space<vmem>>, vector<16x100xbf16>,
    %c0_202 = arith.constant 0 : index
    %c21_203 = arith.constant 21 : index
    %139 = vector.load %arg14[%c0_202, %c21_203] : memref<16x122xbf16, #tpu.memory_space<vmem>>, vector<16x100xbf16>
    %c112_204 = arith.constant 112 : index
    %c0_205 = arith.constant 0 : index
    %140 = vector.load %arg15[%c112_204, %c0_205] : memref<144x100xbf16, #tpu.memory_space<vmem>>, vector<16x100xbf16>
    tpu.vector_store %arg15[%c112_204, %c0_205], %139 {strides = array<i32>} : memref<144x100xbf16, #tpu.memory_space<vmem>>, vector<16x100xbf16>,
    %c0_206 = arith.constant 0 : index
    %c22_207 = arith.constant 22 : index
    %141 = vector.load %arg14[%c0_206, %c22_207] : memref<16x122xbf16, #tpu.memory_space<vmem>>, vector<16x100xbf16>
    %c128_208 = arith.constant 128 : index
    %c0_209 = arith.constant 0 : index
    %142 = vector.load %arg15[%c128_208, %c0_209] : memref<144x100xbf16, #tpu.memory_space<vmem>>, vector<16x100xbf16>
    tpu.vector_store %arg15[%c128_208, %c0_209], %141 {strides = array<i32>} : memref<144x100xbf16, #tpu.memory_space<vmem>>, vector<16x100xbf16>,
    %c0_210 = arith.constant 0 : index
    %c0_211 = arith.constant 0 : index
    %143 = vector.load %arg11[%c0_210, %c0_211] : memref<4x144xbf16, #tpu.memory_space<vmem>>, vector<4x144xbf16>
    %c0_212 = arith.constant 0 : index
    %c0_213 = arith.constant 0 : index
    %144 = vector.load %arg15[%c0_212, %c0_213] : memref<144x100xbf16, #tpu.memory_space<vmem>>, vector<144x100xbf16>
    %cst_214 = arith.constant dense<0.000000e+00> : vector<4x100xf32>
    %145 = tpu.matmul %143, %144, %cst_214 {dimension_numbers = #tpu.dot_dimension_numbers<[1], [0], [0], [1], [0, 0, 1, 1], [], []>} : vector<4x144xbf16>, vector<144x100xbf16>, vector<4x100xf32> -> vector<4x100xf32>
    %c0_215 = arith.constant 0 : index
    %c0_216 = arith.constant 0 : index
    %146 = vector.load %arg12[%c0_215, %c0_216] : memref<4x1xf32, #tpu.memory_space<vmem>>, vector<4x1xf32>
    %147 = vector.broadcast %146 : vector<4x1xf32> to vector<4x100xf32>
    %148 = arith.addf %145, %147 : vector<4x100xf32>
    %149 = vector.broadcast %0 : vector<1x100xf32> to vector<4x100xf32>
    %150 = arith.mulf %148, %149 : vector<4x100xf32>
    %cst_217 = arith.constant dense<0.000000e+00> : vector<4xf32>
    %151 = vector.multi_reduction <add>, %150, %cst_217 [1] : vector<4x100xf32> to vector<4xf32>
    %152 = vector.shape_cast %151 : vector<4xf32> to vector<4x1xf32>
    %cst_218 = arith.constant 1.562500e-02 : f32
    %153 = vector.broadcast %cst_218 : f32 to vector<4x1xf32>
    %154 = arith.mulf %152, %153 : vector<4x1xf32>
    %155 = vector.broadcast %154 : vector<4x1xf32> to vector<4x100xf32>
    %156 = arith.subf %148, %155 : vector<4x100xf32>
    %157 = vector.broadcast %0 : vector<1x100xf32> to vector<4x100xf32>
    %158 = arith.mulf %156, %157 : vector<4x100xf32>
    %159 = arith.mulf %158, %158 : vector<4x100xf32>
    %cst_219 = arith.constant dense<0.000000e+00> : vector<4xf32>
    %160 = vector.multi_reduction <add>, %159, %cst_219 [1] : vector<4x100xf32> to vector<4xf32>
    %161 = vector.shape_cast %160 : vector<4xf32> to vector<4x1xf32>
    %cst_220 = arith.constant 1.562500e-02 : f32
    %162 = vector.broadcast %cst_220 : f32 to vector<4x1xf32>
    %163 = arith.mulf %161, %162 : vector<4x1xf32>
    %cst_221 = arith.constant 9.99999974E-6 : f32
    %164 = vector.broadcast %cst_221 : f32 to vector<4x1xf32>
    %165 = arith.addf %163, %164 : vector<4x1xf32>
    %166 = math.rsqrt %165 : vector<4x1xf32>
    %167 = vector.broadcast %166 : vector<4x1xf32> to vector<4x100xf32>
    %168 = arith.mulf %158, %167 : vector<4x100xf32>
    %cst_222 = arith.constant 0.000000e+00 : f32
    %169 = vector.broadcast %cst_222 : f32 to vector<4x100xf32>
    %170 = arith.maximumf %168, %169 : vector<4x100xf32>
    %c0_223 = arith.constant 0 : index
    %c0_224 = arith.constant 0 : index
    %c0_225 = arith.constant 0 : index
    %171 = vector.load %arg13[%c0_223, %c0_224, %c0_225] : memref<1x4x100xf32, #tpu.memory_space<vmem>>, vector<1x4x100xf32>
    %172 = vector.shape_cast %171 : vector<1x4x100xf32> to vector<4x100xf32>
    %173 = vector.shape_cast %170 : vector<4x100xf32> to vector<1x4x100xf32>
    tpu.vector_store %arg13[%c0_223, %c0_224, %c0_225], %173 {strides = array<i32>} : memref<1x4x100xf32, #tpu.memory_space<vmem>>, vector<1x4x100xf32>,
    return
  }
  func.func @transform_0(%arg0: i32) -> (i32, i32) {
    %c0_i32 = arith.constant 0 : i32
    %c0_i32_0 = arith.constant 0 : i32
    %c0_i32_1 = arith.constant 0 : i32
    return %c0_i32, %c0_i32_0 : i32, i32
  }
  func.func @transform_1(%arg0: i32) -> (i32, i32, i32) {
    %c0_i32 = arith.constant 0 : i32
    %c0_i32_0 = arith.constant 0 : i32
    %c0_i32_1 = arith.constant 0 : i32
    return %arg0, %c0_i32, %c0_i32_0 : i32, i32, i32
  }
  func.func @transform_2(%arg0: i32) -> (i32, i32) {
    %c0_i32 = arith.constant 0 : i32
    %c0_i32_0 = arith.constant 0 : i32
    %c0_i32_1 = arith.constant 0 : i32
    return %c0_i32, %c0_i32_0 : i32, i32
  }
  func.func @transform_3(%arg0: i32) -> (i32, i32) {
    %c0_i32 = arith.constant 0 : i32
    %c0_i32_0 = arith.constant 0 : i32
    %c0_i32_1 = arith.constant 0 : i32
    return %c0_i32, %c0_i32_0 : i32, i32
  }
  func.func @transform_4(%arg0: i32) -> (i32, i32) {
    %c0_i32 = arith.constant 0 : i32
    %c0_i32_0 = arith.constant 0 : i32
    %c0_i32_1 = arith.constant 0 : i32
    return %c0_i32, %c0_i32_0 : i32, i32
  }
  func.func @transform_5(%arg0: i32) -> (i32, i32) {
    %c0_i32 = arith.constant 0 : i32
    %c0_i32_0 = arith.constant 0 : i32
    %c0_i32_1 = arith.constant 0 : i32
    return %c0_i32, %c0_i32_0 : i32, i32
  }
  func.func @transform_6(%arg0: i32) -> (i32, i32) {
    %c0_i32 = arith.constant 0 : i32
    %c0_i32_0 = arith.constant 0 : i32
    %c0_i32_1 = arith.constant 0 : i32
    return %c0_i32, %c0_i32_0 : i32, i32
  }
  func.func @transform_7(%arg0: i32) -> (i32, i32) {
    %c0_i32 = arith.constant 0 : i32
    %c0_i32_0 = arith.constant 0 : i32
    %c0_i32_1 = arith.constant 0 : i32
    return %c0_i32, %c0_i32_0 : i32, i32
  }
  func.func @transform_8(%arg0: i32) -> (i32, i32) {
    %c0_i32 = arith.constant 0 : i32
    %c0_i32_0 = arith.constant 0 : i32
    %c0_i32_1 = arith.constant 0 : i32
    return %c0_i32, %c0_i32_0 : i32, i32
  }
  func.func @transform_9(%arg0: i32) -> (i32, i32) {
    %c0_i32 = arith.constant 0 : i32
    %c0_i32_0 = arith.constant 0 : i32
    %c0_i32_1 = arith.constant 0 : i32
    return %c0_i32, %c0_i32_0 : i32, i32
  }
  func.func @transform_10(%arg0: i32) -> (i32, i32) {
    %c0_i32 = arith.constant 0 : i32
    %c0_i32_0 = arith.constant 0 : i32
    %c0_i32_1 = arith.constant 0 : i32
    return %c0_i32, %c0_i32_0 : i32, i32
  }
  func.func @transform_11(%arg0: i32) -> (i32, i32) {
    %c0_i32 = arith.constant 0 : i32
    %c0_i32_0 = arith.constant 0 : i32
    %c0_i32_1 = arith.constant 0 : i32
    return %c0_i32, %c0_i32_0 : i32, i32
  }
  func.func @transform_12(%arg0: i32) -> (i32, i32, i32) {
    %c0_i32 = arith.constant 0 : i32
    %c0_i32_0 = arith.constant 0 : i32
    %c0_i32_1 = arith.constant 0 : i32
    return %arg0, %c0_i32, %c0_i32_0 : i32, i32, i32
  }
}

</mosaic_0001>

<llo_original>
// kernel: cmp2d_forward.1
$region0: #{cmp2d_forward.1}
  #allocation0 [shape = 'u32[]', space=smem, size = 0x4, offset = 0x4, fixed_abs, tag = 'smem constant byte address 0x4 - core index']
  #allocation1 [shape = 'u32[72,128]{1,0:T(1,128)}', space=vmem, size = 0x9000, scoped, tag = 'internal scratch']
  #allocation2 [shape = 'bf16[16,122]{1,0:T(8,128)(2,1)}', space=vmem, size = 0x1000, scoped, tag = 'scratch operand']
  #allocation3 [shape = 'bf16[144,100]{1,0:T(8,128)(2,1)}', space=vmem, size = 0x9000, scoped, tag = 'scratch operand']
  %s0 = inlined_call_operand.vmem [shape: f32[1,100], index: 0, kind: input, shape index: {}]
  %s1 = inlined_call_operand.vmem [shape: f32[4,12,100], index: 1, kind: input, shape index: {}]
  %s2 = inlined_call_operand.vmem [shape: bf16[12,144], index: 2, kind: input, shape index: {}]
  %s3 = inlined_call_operand.vmem [shape: f32[12,1], index: 3, kind: input, shape index: {}]
  %s4 = inlined_call_operand.vmem [shape: bf16[12,144], index: 4, kind: input, shape index: {}]
  %s5 = inlined_call_operand.vmem [shape: f32[12,1], index: 5, kind: input, shape index: {}]
  %s6 = inlined_call_operand.vmem [shape: bf16[12,144], index: 6, kind: input, shape index: {}]
  %s7 = inlined_call_operand.vmem [shape: f32[12,1], index: 7, kind: input, shape index: {}]
  %s8 = inlined_call_operand.vmem [shape: bf16[12,144], index: 8, kind: input, shape index: {}]
  %s9 = inlined_call_operand.vmem [shape: f32[12,1], index: 9, kind: input, shape index: {}]
  %s10 = inlined_call_operand.vmem [shape: bf16[4,144], index: 10, kind: input, shape index: {}]
  %s11 = inlined_call_operand.vmem [shape: f32[4,1], index: 11, kind: input, shape index: {}]
  %s12 = inlined_call_operand.vmem [shape: f32[4,4,100], index: 12, kind: output, shape index: {}]
  %s13 = sld [smem:[#allocation0]]
  $region81: #{cmp2d_forward.1} parent=0
    _
  %s15 = ssub.s32 1, %s13
  %s16 = scalar_select 0, %s15, %s13
  loop: start=0, step=1, limit=6
  $region2: #{cmp2d_forward.1} parent=0 // loop_pre_header
    _
  $region3: #{cmp2d_forward.1} parent=0 // loop_header
    %s18 = sphi 0, %s22
    %p19 = scmp.ge.s32.totalorder %s18, 6
    %s26 = sphi 0, %s26
    %s28 = sphi 0, %s26
    %s29 = sphi 0, %s28
    %s43 = sphi 0, %s29
    %s49 = sphi 0, %s51
    %s52 = sphi 0, %s49
    %s53 = sphi 0, %s52
    %s69 = sphi 0, %s53
    %s73 = sphi 0, %s73
    %s75 = sphi 0, %s73
    %s76 = sphi 0, %s75
    %s90 = sphi 0, %s76
    %s94 = sphi 0, %s94
    %s96 = sphi 0, %s94
    %s97 = sphi 0, %s96
    %s111 = sphi 0, %s97
    %s115 = sphi 0, %s115
    %s117 = sphi 0, %s115
    %s118 = sphi 0, %s117
    %s132 = sphi 0, %s118
    %s136 = sphi 0, %s136
    %s138 = sphi 0, %s136
    %s139 = sphi 0, %s138
    %s153 = sphi 0, %s139
    %s157 = sphi 0, %s157
    %s159 = sphi 0, %s157
    %s160 = sphi 0, %s159
    %s174 = sphi 0, %s160
    %s178 = sphi 0, %s178
    %s180 = sphi 0, %s178
    %s181 = sphi 0, %s180
    %s195 = sphi 0, %s181
    %s199 = sphi 0, %s199
    %s201 = sphi 0, %s199
    %s202 = sphi 0, %s201
    %s216 = sphi 0, %s202
    %s220 = sphi 0, %s220
    %s222 = sphi 0, %s220
    %s223 = sphi 0, %s222
    %s237 = sphi 0, %s223
    %s241 = sphi 0, %s241
    %s243 = sphi 0, %s241
    %s244 = sphi 0, %s243
    %s258 = sphi 0, %s244
    %s262 = sphi 0, %s262
    %s264 = sphi 0, %s262
    %s265 = sphi 0, %s264
    %s279 = sphi 0, %s265
    %s285 = sphi 0, %s287
    %s288 = sphi 0, %s285
    %s289 = sphi 0, %s288
    %s305 = sphi 0, %s289
  $region4: #{cmp2d_forward.1} parent=0 // loop_header_branch
    %21 = sbr.rel (%p19) target = $region8
  $region5: #{cmp2d_forward.1} parent=0 // loop_body
    %s23 = ssub.s32 %s18, 1
    %s24 = ssub.s32 %s18, 2
    %s25 = sadd.s32 %s18, 1
    %s27 = sadd.s32 %s26, 1
    %p30 = scmp.eq.s32.totalorder %s18, 3
    %p31 = scmp.ne.s32.totalorder %s26, %s28
    %p32 = scmp.eq.s32.totalorder %s18, 0
    %p33 = por %p31, %p32
    %p34 = scmp.ne.s32.totalorder %s26, %s28
    %p35 = scmp.eq.s32.totalorder %s23, 3
    %p36 = por %p34, %p35
    %p37 = scmp.ne.s32.totalorder %s28, %s29
    %p38 = scmp.eq.s32.totalorder %s23, 0
    %p39 = por %p37, %p38
    %p40 = scmp.ne.s32.totalorder %s28, %s29
    %p41 = scmp.eq.s32.totalorder %s24, 3
    %p42 = por %p40, %p41
    %p44 = scmp.ne.s32.totalorder %s29, %s43
    %p45 = scmp.eq.s32.totalorder %s24, 0
    %p46 = por %p44, %p45
    %s47 = ssub.s32 %s18, %s25
    %p48 = scmp.eq.s32.totalorder %s47, 0
    %s50 = sadd.s32 %s49, 1
    %s51 = scalar_select %p48, %s49, %s50
    %p54 = pneg %p48
    %p55 = scmp.eq.s32.totalorder %s18, 3
    %p56 = por %p54, %p55
    %p57 = scmp.ne.s32.totalorder %s49, %s52
    %p58 = scmp.eq.s32.totalorder %s18, 0
    %p59 = por %p57, %p58
    %p60 = scmp.ne.s32.totalorder %s49, %s52
    %p61 = scmp.eq.s32.totalorder %s23, 3
    %p62 = por %p60, %p61
    %p63 = scmp.ne.s32.totalorder %s52, %s53
    %p64 = scmp.eq.s32.totalorder %s23, 0
    %p65 = por %p63, %p64
    %p66 = scmp.ne.s32.totalorder %s52, %s53
    %p67 = scmp.eq.s32.totalorder %s24, 3
    %p68 = por %p66, %p67
    %p70 = scmp.ne.s32.totalorder %s53, %s69
    %p71 = scmp.eq.s32.totalorder %s24, 0
    %p72 = por %p70, %p71
    %s74 = sadd.s32 %s73, 1
    %p77 = scmp.eq.s32.totalorder %s18, 3
    %p78 = scmp.ne.s32.totalorder %s73, %s75
    %p79 = scmp.eq.s32.totalorder %s18, 0
    %p80 = por %p78, %p79
    %p81 = scmp.ne.s32.totalorder %s73, %s75
    %p82 = scmp.eq.s32.totalorder %s23, 3
    %p83 = por %p81, %p82
    %p84 = scmp.ne.s32.totalorder %s75, %s76
    %p85 = scmp.eq.s32.totalorder %s23, 0
    %p86 = por %p84, %p85
    %p87 = scmp.ne.s32.totalorder %s75, %s76
    %p88 = scmp.eq.s32.totalorder %s24, 3
    %p89 = por %p87, %p88
    %p91 = scmp.ne.s32.totalorder %s76, %s90
    %p92 = scmp.eq.s32.totalorder %s24, 0
    %p93 = por %p91, %p92
    %s95 = sadd.s32 %s94, 1
    %p98 = scmp.eq.s32.totalorder %s18, 3
    %p99 = scmp.ne.s32.totalorder %s94, %s96
    %p100 = scmp.eq.s32.totalorder %s18, 0
    %p101 = por %p99, %p100
    %p102 = scmp.ne.s32.totalorder %s94, %s96
    %p103 = scmp.eq.s32.totalorder %s23, 3
    %p104 = por %p102, %p103
    %p105 = scmp.ne.s32.totalorder %s96, %s97
    %p106 = scmp.eq.s32.totalorder %s23, 0
    %p107 = por %p105, %p106
    %p108 = scmp.ne.s32.totalorder %s96, %s97
    %p109 = scmp.eq.s32.totalorder %s24, 3
    %p110 = por %p108, %p109
    %p112 = scmp.ne.s32.totalorder %s97, %s111
    %p113 = scmp.eq.s32.totalorder %s24, 0
    %p114 = por %p112, %p113
    %s116 = sadd.s32 %s115, 1
    %p119 = scmp.eq.s32.totalorder %s18, 3
    %p120 = scmp.ne.s32.totalorder %s115, %s117
    %p121 = scmp.eq.s32.totalorder %s18, 0
    %p122 = por %p120, %p121
    %p123 = scmp.ne.s32.totalorder %s115, %s117
    %p124 = scmp.eq.s32.totalorder %s23, 3
    %p125 = por %p123, %p124
    %p126 = scmp.ne.s32.totalorder %s117, %s118
    %p127 = scmp.eq.s32.totalorder %s23, 0
    %p128 = por %p126, %p127
    %p129 = scmp.ne.s32.totalorder %s117, %s118
    %p130 = scmp.eq.s32.totalorder %s24, 3
    %p131 = por %p129, %p130
    %p133 = scmp.ne.s32.totalorder %s118, %s132
    %p134 = scmp.eq.s32.totalorder %s24, 0
    %p135 = por %p133, %p134
    %s137 = sadd.s32 %s136, 1
    %p140 = scmp.eq.s32.totalorder %s18, 3
    %p141 = scmp.ne.s32.totalorder %s136, %s138
    %p142 = scmp.eq.s32.totalorder %s18, 0
    %p143 = por %p141, %p142
    %p144 = scmp.ne.s32.totalorder %s136, %s138
    %p145 = scmp.eq.s32.totalorder %s23, 3
    %p146 = por %p144, %p145
    %p147 = scmp.ne.s32.totalorder %s138, %s139
    %p148 = scmp.eq.s32.totalorder %s23, 0
    %p149 = por %p147, %p148
    %p150 = scmp.ne.s32.totalorder %s138, %s139
    %p151 = scmp.eq.s32.totalorder %s24, 3
    %p152 = por %p150, %p151
    %p154 = scmp.ne.s32.totalorder %s139, %s153
    %p155 = scmp.eq.s32.totalorder %s24, 0
    %p156 = por %p154, %p155
    %s158 = sadd.s32 %s157, 1
    %p161 = scmp.eq.s32.totalorder %s18, 3
    %p162 = scmp.ne.s32.totalorder %s157, %s159
    %p163 = scmp.eq.s32.totalorder %s18, 0
    %p164 = por %p162, %p163
    %p165 = scmp.ne.s32.totalorder %s157, %s159
    %p166 = scmp.eq.s32.totalorder %s23, 3
    %p167 = por %p165, %p166
    %p168 = scmp.ne.s32.totalorder %s159, %s160
    %p169 = scmp.eq.s32.totalorder %s23, 0
    %p170 = por %p168, %p169
    %p171 = scmp.ne.s32.totalorder %s159, %s160
    %p172 = scmp.eq.s32.totalorder %s24, 3
    %p173 = por %p171, %p172
    %p175 = scmp.ne.s32.totalorder %s160, %s174
    %p176 = scmp.eq.s32.totalorder %s24, 0
    %p177 = por %p175, %p176
    %s179 = sadd.s32 %s178, 1
    %p182 = scmp.eq.s32.totalorder %s18, 3
    %p183 = scmp.ne.s32.totalorder %s178, %s180
    %p184 = scmp.eq.s32.totalorder %s18, 0
    %p185 = por %p183, %p184
    %p186 = scmp.ne.s32.totalorder %s178, %s180
    %p187 = scmp.eq.s32.totalorder %s23, 3
    %p188 = por %p186, %p187
    %p189 = scmp.ne.s32.totalorder %s180, %s181
    %p190 = scmp.eq.s32.totalorder %s23, 0
    %p191 = por %p189, %p190
    %p192 = scmp.ne.s32.totalorder %s180, %s181
    %p193 = scmp.eq.s32.totalorder %s24, 3
    %p194 = por %p192, %p193
    %p196 = scmp.ne.s32.totalorder %s181, %s195
    %p197 = scmp.eq.s32.totalorder %s24, 0
    %p198 = por %p196, %p197
    %s200 = sadd.s32 %s199, 1
    %p203 = scmp.eq.s32.totalorder %s18, 3
    %p204 = scmp.ne.s32.totalorder %s199, %s201
    %p205 = scmp.eq.s32.totalorder %s18, 0
    %p206 = por %p204, %p205
    %p207 = scmp.ne.s32.totalorder %s199, %s201
    %p208 = scmp.eq.s32.totalorder %s23, 3
    %p209 = por %p207, %p208
    %p210 = scmp.ne.s32.totalorder %s201, %s202
    %p211 = scmp.eq.s32.totalorder %s23, 0
    %p212 = por %p210, %p211
    %p213 = scmp.ne.s32.totalorder %s201, %s202
    %p214 = scmp.eq.s32.totalorder %s24, 3
    %p215 = por %p213, %p214
    %p217 = scmp.ne.s32.totalorder %s202, %s216
    %p218 = scmp.eq.s32.totalorder %s24, 0
    %p219 = por %p217, %p218
    %s221 = sadd.s32 %s220, 1
    %p224 = scmp.eq.s32.totalorder %s18, 3
    %p225 = scmp.ne.s32.totalorder %s220, %s222
    %p226 = scmp.eq.s32.totalorder %s18, 0
    %p227 = por %p225, %p226
    %p228 = scmp.ne.s32.totalorder %s220, %s222
    %p229 = scmp.eq.s32.totalorder %s23, 3
    %p230 = por %p228, %p229
    %p231 = scmp.ne.s32.totalorder %s222, %s223
    %p232 = scmp.eq.s32.totalorder %s23, 0
    %p233 = por %p231, %p232
    %p234 = scmp.ne.s32.totalorder %s222, %s223
    %p235 = scmp.eq.s32.totalorder %s24, 3
    %p236 = por %p234, %p235
    %p238 = scmp.ne.s32.totalorder %s223, %s237
    %p239 = scmp.eq.s32.totalorder %s24, 0
    %p240 = por %p238, %p239
    %s242 = sadd.s32 %s241, 1
    %p245 = scmp.eq.s32.totalorder %s18, 3
    %p246 = scmp.ne.s32.totalorder %s241, %s243
    %p247 = scmp.eq.s32.totalorder %s18, 0
    %p248 = por %p246, %p247
    %p249 = scmp.ne.s32.totalorder %s241, %s243
    %p250 = scmp.eq.s32.totalorder %s23, 3
    %p251 = por %p249, %p250
    %p252 = scmp.ne.s32.totalorder %s243, %s244
    %p253 = scmp.eq.s32.totalorder %s23, 0
    %p254 = por %p252, %p253
    %p255 = scmp.ne.s32.totalorder %s243, %s244
    %p256 = scmp.eq.s32.totalorder %s24, 3
    %p257 = por %p255, %p256
    %p259 = scmp.ne.s32.totalorder %s244, %s258
    %p260 = scmp.eq.s32.totalorder %s24, 0
    %p261 = por %p259, %p260
    %s263 = sadd.s32 %s262, 1
    %p266 = scmp.eq.s32.totalorder %s18, 3
    %p267 = scmp.ne.s32.totalorder %s262, %s264
    %p268 = scmp.eq.s32.totalorder %s18, 0
    %p269 = por %p267, %p268
    %p270 = scmp.ne.s32.totalorder %s262, %s264
    %p271 = scmp.eq.s32.totalorder %s23, 3
    %p272 = por %p270, %p271
    %p273 = scmp.ne.s32.totalorder %s264, %s265
    %p274 = scmp.eq.s32.totalorder %s23, 0
    %p275 = por %p273, %p274
    %p276 = scmp.ne.s32.totalorder %s264, %s265
    %p277 = scmp.eq.s32.totalorder %s24, 3
    %p278 = por %p276, %p277
    %p280 = scmp.ne.s32.totalorder %s265, %s279
    %p281 = scmp.eq.s32.totalorder %s24, 0
    %p282 = por %p280, %p281
    %s283 = ssub.s32 %s18, %s25
    %p284 = scmp.eq.s32.totalorder %s283, 0
    %s286 = sadd.s32 %s285, 1
    %s287 = scalar_select %p284, %s285, %s286
    %p290 = pneg %p284
    %p291 = scmp.eq.s32.totalorder %s18, 3
    %p292 = por %p290, %p291
    %p293 = scmp.ne.s32.totalorder %s285, %s288
    %p294 = scmp.eq.s32.totalorder %s18, 0
    %p295 = por %p293, %p294
    %p296 = scmp.ne.s32.totalorder %s285, %s288
    %p297 = scmp.eq.s32.totalorder %s23, 3
    %p298 = por %p296, %p297
    %p299 = scmp.ne.s32.totalorder %s288, %s289
    %p300 = scmp.eq.s32.totalorder %s23, 0
    %p301 = por %p299, %p300
    %p302 = scmp.ne.s32.totalorder %s288, %s289
    %p303 = scmp.eq.s32.totalorder %s24, 3
    %p304 = por %p302, %p303
    %p306 = scmp.ne.s32.totalorder %s289, %s305
    %p307 = scmp.eq.s32.totalorder %s24, 0
    %p308 = por %p306, %p307
    %p309 = scmp.le.s32.totalorder 1, %s18
    %p310 = scmp.lt.s32.totalorder %s18, 5
    %p311 = pnand %p309, %p310
    %p312 = pneg %p311
    // Predicated region
    $region9: #{cmp2d_forward.1} parent=5 // pred_check
      _
    $region10: #{cmp2d_forward.1} parent=5 // pred_check_branch
      %314 = sbr.rel (%p311) target = $region12
    $region11: #{cmp2d_forward.1} parent=5 // pred_region
      %s315 = ssub.s32 %s18, 1
      // Predicated region
      $region13: #{cmp2d_forward.1} parent=11 // pred_check
        %p316 = pneg %p39
      $region14: #{cmp2d_forward.1} parent=11 // pred_check_branch
        %318 = sbr.rel (%p316) target = $region16
      $region15: #{cmp2d_forward.1} parent=11 // pred_region
        _
      $region16: #{cmp2d_forward.1} parent=11 // pred_fallthru
        _
      // Predicated region
      $region17: #{cmp2d_forward.1} parent=11 // pred_check
        %p319 = pneg %p86
      $region18: #{cmp2d_forward.1} parent=11 // pred_check_branch
        %321 = sbr.rel (%p319) target = $region20
      $region19: #{cmp2d_forward.1} parent=11 // pred_region
        _
      $region20: #{cmp2d_forward.1} parent=11 // pred_fallthru
        _
      // Predicated region
      $region21: #{cmp2d_forward.1} parent=11 // pred_check
        %p322 = pneg %p107
      $region22: #{cmp2d_forward.1} parent=11 // pred_check_branch
        %324 = sbr.rel (%p322) target = $region24
      $region23: #{cmp2d_forward.1} parent=11 // pred_region
        _
      $region24: #{cmp2d_forward.1} parent=11 // pred_fallthru
        _
      // Predicated region
      $region25: #{cmp2d_forward.1} parent=11 // pred_check
        %p325 = pneg %p128
      $region26: #{cmp2d_forward.1} parent=11 // pred_check_branch
        %327 = sbr.rel (%p325) target = $region28
      $region27: #{cmp2d_forward.1} parent=11 // pred_region
        _
      $region28: #{cmp2d_forward.1} parent=11 // pred_fallthru
        _
      // Predicated region
      $region29: #{cmp2d_forward.1} parent=11 // pred_check
        %p328 = pneg %p149
      $region30: #{cmp2d_forward.1} parent=11 // pred_check_branch
        %330 = sbr.rel (%p328) target = $region32
      $region31: #{cmp2d_forward.1} parent=11 // pred_region
        _
      $region32: #{cmp2d_forward.1} parent=11 // pred_fallthru
        _
      // Predicated region
      $region33: #{cmp2d_forward.1} parent=11 // pred_check
        %p331 = pneg %p170
      $region34: #{cmp2d_forward.1} parent=11 // pred_check_branch
        %333 = sbr.rel (%p331) target = $region36
      $region35: #{cmp2d_forward.1} parent=11 // pred_region
        _
      $region36: #{cmp2d_forward.1} parent=11 // pred_fallthru
        _
      // Predicated region
      $region37: #{cmp2d_forward.1} parent=11 // pred_check
        %p334 = pneg %p191
      $region38: #{cmp2d_forward.1} parent=11 // pred_check_branch
        %336 = sbr.rel (%p334) target = $region40
      $region39: #{cmp2d_forward.1} parent=11 // pred_region
        _
      $region40: #{cmp2d_forward.1} parent=11 // pred_fallthru
        _
      // Predicated region
      $region41: #{cmp2d_forward.1} parent=11 // pred_check
        %p337 = pneg %p212
      $region42: #{cmp2d_forward.1} parent=11 // pred_check_branch
        %339 = sbr.rel (%p337) target = $region44
      $region43: #{cmp2d_forward.1} parent=11 // pred_region
        _
      $region44: #{cmp2d_forward.1} parent=11 // pred_fallthru
        _
      // Predicated region
      $region45: #{cmp2d_forward.1} parent=11 // pred_check
        %p340 = pneg %p233
      $region46: #{cmp2d_forward.1} parent=11 // pred_check_branch
        %342 = sbr.rel (%p340) target = $region48
      $region47: #{cmp2d_forward.1} parent=11 // pred_region
        _
      $region48: #{cmp2d_forward.1} parent=11 // pred_fallthru
        _
      // Predicated region
      $region49: #{cmp2d_forward.1} parent=11 // pred_check
        %p343 = pneg %p254
      $region50: #{cmp2d_forward.1} parent=11 // pred_check_branch
        %345 = sbr.rel (%p343) target = $region52
      $region51: #{cmp2d_forward.1} parent=11 // pred_region
        _
      $region52: #{cmp2d_forward.1} parent=11 // pred_fallthru
        _
      // Predicated region
      $region53: #{cmp2d_forward.1} parent=11 // pred_check
        %p346 = pneg %p275
      $region54: #{cmp2d_forward.1} parent=11 // pred_check_branch
        %348 = sbr.rel (%p346) target = $region56
      $region55: #{cmp2d_forward.1} parent=11 // pred_region
        _
      $region56: #{cmp2d_forward.1} parent=11 // pred_fallthru
        _
    $region12: #{cmp2d_forward.1} parent=5 // pred_fallthru
      _
    %p349 = scmp.lt.s32.totalorder %s18, 4
    // Predicated region
    $region57: #{cmp2d_forward.1} parent=5 // pred_check
      %p350 = pneg %p349
    $region58: #{cmp2d_forward.1} parent=5 // pred_check_branch
      %352 = sbr.rel (%p350) target = $region60
    $region59: #{cmp2d_forward.1} parent=5 // pred_region
      // Predicated region
      $region61: #{cmp2d_forward.1} parent=59 // pred_check
        %p353 = pneg %p59
      $region62: #{cmp2d_forward.1} parent=59 // pred_check_branch
        %355 = sbr.rel (%p353) target = $region64
      $region63: #{cmp2d_forward.1} parent=59 // pred_region
        %p356 = scmp.lt.s32.totalorder %s18, 3
        %s357 = scalar_select %p356, %s18, 3
        %s358 = smul.addr %s357, 2
        %s359 = smul.addr %s358, 8
        %s360 = scalar_lea.vmem %s1, %s359
      $region64: #{cmp2d_forward.1} parent=59 // pred_fallthru
        _
    $region60: #{cmp2d_forward.1} parent=5 // pred_fallthru
      _
    %p361 = scmp.le.s32.totalorder 1, %s18
    %p362 = scmp.lt.s32.totalorder %s18, 5
    %p363 = pnand %p361, %p362
    %p364 = pneg %p363
    // Predicated region
    $region65: #{cmp2d_forward.1} parent=5 // pred_check
      _
    $region66: #{cmp2d_forward.1} parent=5 // pred_check_branch
      %366 = sbr.rel (%p363) target = $region68
    $region67: #{cmp2d_forward.1} parent=5 // pred_region
      %s367 = ssub.s32 %s18, 1
      %p368 = pneg %p39
      %p369 = pneg %p36
      %p370 = scmp.lt.s32.totalorder %s23, 3
      %s371 = scalar_select %p370, %s23, 3
      %s372 = smul.addr %s371, 2
      %s373 = smul.addr %s372, 8
      %s374 = scalar_lea.vmem %s1, %s373
      %p375 = pneg %p65
      %p376 = pneg %p62
      %p377 = pneg %p86
      %p378 = pneg %p83
      %p379 = pneg %p107
      %p380 = pneg %p104
      %p381 = pneg %p128
      %p382 = pneg %p125
      %p383 = pneg %p149
      %p384 = pneg %p146
      %p385 = pneg %p170
      %p386 = pneg %p167
      %p387 = pneg %p191
      %p388 = pneg %p188
      %p389 = pneg %p212
      %p390 = pneg %p209
      %p391 = pneg %p233
      %p392 = pneg %p230
      %p393 = pneg %p254
      %p394 = pneg %p251
      %p395 = pneg %p275
      %p396 = pneg %p272
      %p397 = pneg %p301
      %p398 = pneg %p298
      %p399 = scmp.lt.s32.totalorder %s23, 3
      %s400 = scalar_select %p399, %s23, 3
      %s401 = smul.addr %s400, 4
      %s402 = scalar_lea.vmem %s12, %s401
      %p403 = scmp.lt.s32.totalorder %s23, 3
      %s404 = scalar_select %p403, %s23, 3
      %s405 = smul.addr %s404, 2
      %s406 = smul.addr %s405, 8
      %s407 = scalar_lea.vmem %s1, %s406
      %p408 = scmp.lt.s32.totalorder %s23, 3
      %s409 = scalar_select %p408, %s23, 3
      %s410 = smul.addr %s409, 4
      %s411 = scalar_lea.vmem %s12, %s410
      %v413 = vld [vmem:[%s0] sm:$0x1]
      %vm414 = vcmask 994304
      %415 = vst.msk [vmem:[#allocation2] sm:$0xf] %vm414, 0
      %416 = vst.msk [vmem:[#allocation2 + $0x4] sm:$0xf] %vm414, 0
      %v417 = vld [vmem:[%s407] sm:$0xff]
      %v418 = vld [vmem:[%s407 + $0x8] sm:$0xf]
      %v419 = vpack.c.bf16 %v417, %v417
      %v420 = vpack.c.bf16 %v418, %v418
      %423 = vrot.lane.b32.xlu0 %v419, 11
      %v424 = vpop.permute.xlu0 %423
      %425 = vrot.lane.b32.xlu0 %v420, 11
      %v426 = vpop.permute.xlu0 %425
      %vm429 = vcmask 904280
      %430 = vst.msk [vmem:[#allocation2] sm:$0xf] %vm429, %v424
      %vm431 = vcmask 902232
      %432 = vst.msk [vmem:[#allocation2 + $0x4] sm:$0x3] %vm431, %v426
      %v433 = vld [vmem:[#allocation2] sm:$0xf]
      %v434 = vld [vmem:[#allocation2 + $0x4] sm:$0xf]
      %vm435 = vcmask 814080
      %436 = vst.msk [vmem:[#allocation3] sm:$0xf] %vm435, %v433
      %437 = vst.msk [vmem:[#allocation3 + $0x4] sm:$0xf] %vm435, %v434
      %v438 = vld [vmem:[#allocation2] sm:$0xf]
      %v439 = vld [vmem:[#allocation2 + $0x4] sm:$0xf]
      %442 = vrot.lane.b32.xlu0 %v438, 127
      %v443 = vpop.permute.xlu0 %442
      %444 = vrot.lane.b32.xlu0 %v439, 127
      %v445 = vpop.permute.xlu0 %444
      %448 = vst.msk [vmem:[#allocation3 + $0x8] sm:$0xf] %vm435, %v443
      %449 = vst.msk [vmem:[#allocation3 + $0xc] sm:$0xf] %vm435, %v445
      %v450 = vld [vmem:[#allocation2] sm:$0xf]
      %v451 = vld [vmem:[#allocation2 + $0x4] sm:$0xf]
      %454 = vrot.lane.b32.xlu0 %v450, 126
      %v455 = vpop.permute.xlu0 %454
      %456 = vrot.lane.b32.xlu0 %v451, 126
      %v457 = vpop.permute.xlu0 %456
      %460 = vst.msk [vmem:[#allocation3 + $0x10] sm:$0xf] %vm435, %v455
      %461 = vst.msk [vmem:[#allocation3 + $0x14] sm:$0xf] %vm435, %v457
      %v462 = vld [vmem:[#allocation2] sm:$0xf]
      %v463 = vld [vmem:[#allocation2 + $0x4] sm:$0xf]
      %466 = vrot.lane.b32.xlu0 %v462, 118
      %v467 = vpop.permute.xlu0 %466
      %468 = vrot.lane.b32.xlu0 %v463, 118
      %v469 = vpop.permute.xlu0 %468
      %472 = vst.msk [vmem:[#allocation3 + $0x18] sm:$0xf] %vm435, %v467
      %473 = vst.msk [vmem:[#allocation3 + $0x1c] sm:$0xf] %vm435, %v469
      %v474 = vld [vmem:[#allocation2] sm:$0xf]
      %v475 = vld [vmem:[#allocation2 + $0x4] sm:$0xf]
      %478 = vrot.lane.b32.xlu0 %v474, 117
      %v479 = vpop.permute.xlu0 %478
      %480 = vrot.lane.b32.xlu0 %v475, 117
      %v481 = vpop.permute.xlu0 %480
      %484 = vst.msk [vmem:[#allocation3 + $0x20] sm:$0xf] %vm435, %v479
      %485 = vst.msk [vmem:[#allocation3 + $0x24] sm:$0xf] %vm435, %v481
      %v486 = vld [vmem:[#allocation2] sm:$0xf]
      %v487 = vld [vmem:[#allocation2 + $0x4] sm:$0xf]
      %490 = vrot.lane.b32.xlu0 %v486, 116
      %v491 = vpop.permute.xlu0 %490
      %492 = vrot.lane.b32.xlu0 %v487, 116
      %v493 = vpop.permute.xlu0 %492
      %496 = vst.msk [vmem:[#allocation3 + $0x28] sm:$0xf] %vm435, %v491
      %497 = vst.msk [vmem:[#allocation3 + $0x2c] sm:$0xf] %vm435, %v493
      %v498 = vld [vmem:[#allocation2] sm:$0xf]
      %v499 = vld [vmem:[#allocation2 + $0x4] sm:$0xf]
      %502 = vrot.lane.b32.xlu0 %v498, 108
      %v503 = vpop.permute.xlu0 %502
      %504 = vrot.lane.b32.xlu0 %v499, 108
      %v505 = vpop.permute.xlu0 %504
      %508 = vst.msk [vmem:[#allocation3 + $0x30] sm:$0xf] %vm435, %v503
      %509 = vst.msk [vmem:[#allocation3 + $0x34] sm:$0xf] %vm435, %v505
      %v510 = vld [vmem:[#allocation2] sm:$0xf]
      %v511 = vld [vmem:[#allocation2 + $0x4] sm:$0xf]
      %514 = vrot.lane.b32.xlu0 %v510, 107
      %v515 = vpop.permute.xlu0 %514
      %516 = vrot.lane.b32.xlu0 %v511, 107
      %v517 = vpop.permute.xlu0 %516
      %520 = vst.msk [vmem:[#allocation3 + $0x38] sm:$0xf] %vm435, %v515
      %521 = vst.msk [vmem:[#allocation3 + $0x3c] sm:$0xf] %vm435, %v517
      %v522 = vld [vmem:[#allocation2] sm:$0xf]
      %v523 = vld [vmem:[#allocation2 + $0x4] sm:$0xf]
      %526 = vrot.lane.b32.xlu0 %v522, 106
      %v527 = vpop.permute.xlu0 %526
      %528 = vrot.lane.b32.xlu0 %v523, 106
      %v529 = vpop.permute.xlu0 %528
      %532 = vst.msk [vmem:[#allocation3 + $0x40] sm:$0xf] %vm435, %v527
      %533 = vst.msk [vmem:[#allocation3 + $0x44] sm:$0xf] %vm435, %v529
      %v534 = vld [vmem:[%s2] sm:$0xff]
      %v535 = vld [vmem:[%s2 + $0x8] sm:$0x33]
      %v536 = vld [vmem:[#allocation3] sm:$0xf]
      %v537 = vld [vmem:[#allocation3 + $0x4] sm:$0xf]
      %v538 = vld [vmem:[#allocation3 + $0x8] sm:$0xf]
      %v539 = vld [vmem:[#allocation3 + $0xc] sm:$0xf]
      %v540 = vld [vmem:[#allocation3 + $0x10] sm:$0xf]
      %v541 = vld [vmem:[#allocation3 + $0x14] sm:$0xf]
      %v542 = vld [vmem:[#allocation3 + $0x18] sm:$0xf]
      %v543 = vld [vmem:[#allocation3 + $0x1c] sm:$0xf]
      %v544 = vld [vmem:[#allocation3 + $0x20] sm:$0xf]
      %v545 = vld [vmem:[#allocation3 + $0x24] sm:$0xf]
      %v546 = vld [vmem:[#allocation3 + $0x28] sm:$0xf]
      %v547 = vld [vmem:[#allocation3 + $0x2c] sm:$0xf]
      %v548 = vld [vmem:[#allocation3 + $0x30] sm:$0xf]
      %v549 = vld [vmem:[#allocation3 + $0x34] sm:$0xf]
      %v550 = vld [vmem:[#allocation3 + $0x38] sm:$0xf]
      %v551 = vld [vmem:[#allocation3 + $0x3c] sm:$0xf]
      %v552 = vld [vmem:[#allocation3 + $0x40] sm:$0xf]
      %v553 = vld [vmem:[#allocation3 + $0x44] sm:$0xf]
      %v554 = vld [vmem:[%s3] sm:$0xff]
      %v555 = vld [vmem:[%s3 + $0x8] sm:$0xf]
      %557 = vset.pattern.permute.xlu0 0
      %558 = vperm.xlu0 %557, %v554
      %v559 = vpop.permute.xlu0 %558
      %562 = vset.pattern.permute.xlu0 0
      %563 = vperm.xlu0 %562, %v555
      %v564 = vpop.permute.xlu0 %563
      %v568 = vunpack.c.l.b16 %v534
      %v569 = vunpack.c.h.b16 %v534
      %v570 = vunpack.c.l.b16 %v535
      %v571 = vunpack.c.h.b16 %v535
      %v572 = vpack.c.b16 %v570, %v568
      %v573 = vpack.c.b16 %v571, %v569
      %v593 = vunpack.c.l.b16 %v536
      %v594 = vunpack.c.l.b16 %v537
      %v595 = vunpack.c.l.b16 %v538
      %v596 = vunpack.c.l.b16 %v539
      %v597 = vunpack.c.l.b16 %v540
      %v598 = vunpack.c.l.b16 %v541
      %v599 = vunpack.c.l.b16 %v542
      %v600 = vunpack.c.l.b16 %v543
      %v601 = vunpack.c.l.b16 %v544
      %v602 = vunpack.c.l.b16 %v545
      %v603 = vunpack.c.l.b16 %v546
      %v604 = vunpack.c.l.b16 %v547
      %v605 = vunpack.c.l.b16 %v548
      %v606 = vunpack.c.l.b16 %v549
      %v607 = vunpack.c.l.b16 %v550
      %v608 = vunpack.c.l.b16 %v551
      %v609 = vunpack.c.l.b16 %v552
      %v610 = vunpack.c.l.b16 %v553
      %v611 = vpack.c.b16 %v594, %v593
      %v612 = vpack.c.b16 %v596, %v595
      %v613 = vpack.c.b16 %v598, %v597
      %v614 = vpack.c.b16 %v600, %v599
      %v615 = vpack.c.b16 %v602, %v601
      %v616 = vpack.c.b16 %v604, %v603
      %v617 = vpack.c.b16 %v606, %v605
      %v618 = vpack.c.b16 %v608, %v607
      %v619 = vpack.c.b16 %v610, %v609
      %vm629 = vcmask 130048
      %v631 = vsel %vm629, %v573, 0
      %633 = vmatpush.bf16.msra.mxu0 %v618
      %634 = vmatpush.bf16.msra.mxu0 %v617
      %635 = vmatpush.bf16.msra.mxu0 %v616
      %636 = vmatpush.bf16.msra.mxu0 %v615
      %637 = vmatpush.bf16.msra.mxu0 %v614
      %638 = vmatpush.bf16.msra.mxu0 %v613
      %639 = vmatpush.bf16.msra.mxu0 %v612
      %640 = vmatpush.bf16.msra.mxu0 %v611
      %641 = vmatmul.bf16.gmra.mxu0 %v572
      %v642 = vpop.f32.mrf.mxu0
      %v643 = vadd.f32 %v559, %v642
      %v644 = vpop.f32.mrf.mxu0
      %v645 = vadd.f32 %v564, %v644
      %646 = vdwg.mxu0
      %647 = vmatpush.bf16.msra.mxu0 0
      %648 = vmatpush.bf16.msra.mxu0 0
      %649 = vmatpush.bf16.msra.mxu0 0
      %650 = vmatpush.bf16.msra.mxu0 0
      %651 = vmatpush.bf16.msra.mxu0 0
      %652 = vmatpush.bf16.msra.mxu0 0
      %653 = vmatpush.bf16.msra.mxu0 0
      %654 = vmatpush.bf16.msra.mxu0 %v619
      %655 = vmatmul.bf16.gmra.mxu0 %v631
      %v656 = vpop.f32.mrf.mxu0
      %v657 = vadd.f32 %v643, %v656
      %v658 = vpop.f32.mrf.mxu0
      %v659 = vadd.f32 %v645, %v658
      %660 = vdwg.mxu0
      %v661 = vmax.f32 %v657, 0.0
      %v662 = vmax.f32 %v659, 0.0
      %v664 = vperm.slane %v413, 0
      %v666 = vmul.f32 %v661, %v664
      %v667 = vmul.f32 %v662, %v664
      %v668 = vpack.c.bf16 %v666, %v666
      %v669 = vpack.c.bf16 %v667, %v667
      %672 = vrot.lane.b32.xlu0 %v668, 11
      %v673 = vpop.permute.xlu0 %672
      %674 = vrot.lane.b32.xlu0 %v669, 11
      %v675 = vpop.permute.xlu0 %674
      %678 = vst.msk [vmem:[#allocation2] sm:$0xf] %vm429, %v673
      %679 = vst.msk [vmem:[#allocation2 + $0x4] sm:$0x3] %vm431, %v675
      %v680 = vld [vmem:[#allocation2] sm:$0xf]
      %v681 = vld [vmem:[#allocation2 + $0x4] sm:$0xf]
      %682 = vst.msk [vmem:[#allocation3] sm:$0xf] %vm435, %v680
      %683 = vst.msk [vmem:[#allocation3 + $0x4] sm:$0xf] %vm435, %v681
      %v684 = vld [vmem:[#allocation2] sm:$0xf]
      %v685 = vld [vmem:[#allocation2 + $0x4] sm:$0xf]
      %688 = vrot.lane.b32.xlu0 %v684, 127
      %v689 = vpop.permute.xlu0 %688
      %690 = vrot.lane.b32.xlu0 %v685, 127
      %v691 = vpop.permute.xlu0 %690
      %694 = vst.msk [vmem:[#allocation3 + $0x8] sm:$0xf] %vm435, %v689
      %695 = vst.msk [vmem:[#allocation3 + $0xc] sm:$0xf] %vm435, %v691
      %v696 = vld [vmem:[#allocation2] sm:$0xf]
      %v697 = vld [vmem:[#allocation2 + $0x4] sm:$0xf]
      %700 = vrot.lane.b32.xlu0 %v696, 126
      %v701 = vpop.permute.xlu0 %700
      %702 = vrot.lane.b32.xlu0 %v697, 126
      %v703 = vpop.permute.xlu0 %702
      %706 = vst.msk [vmem:[#allocation3 + $0x10] sm:$0xf] %vm435, %v701
      %707 = vst.msk [vmem:[#allocation3 + $0x14] sm:$0xf] %vm435, %v703
      %v708 = vld [vmem:[#allocation2] sm:$0xf]
      %v709 = vld [vmem:[#allocation2 + $0x4] sm:$0xf]
      %712 = vrot.lane.b32.xlu0 %v708, 118
      %v713 = vpop.permute.xlu0 %712
      %714 = vrot.lane.b32.xlu0 %v709, 118
      %v715 = vpop.permute.xlu0 %714
      %718 = vst.msk [vmem:[#allocation3 + $0x18] sm:$0xf] %vm435, %v713
      %719 = vst.msk [vmem:[#allocation3 + $0x1c] sm:$0xf] %vm435, %v715
      %v720 = vld [vmem:[#allocation2] sm:$0xf]
      %v721 = vld [vmem:[#allocation2 + $0x4] sm:$0xf]
      %724 = vrot.lane.b32.xlu0 %v720, 117
      %v725 = vpop.permute.xlu0 %724
      %726 = vrot.lane.b32.xlu0 %v721, 117
      %v727 = vpop.permute.xlu0 %726
      %730 = vst.msk [vmem:[#allocation3 + $0x20] sm:$0xf] %vm435, %v725
      %731 = vst.msk [vmem:[#allocation3 + $0x24] sm:$0xf] %vm435, %v727
      %v732 = vld [vmem:[#allocation2] sm:$0xf]
      %v733 = vld [vmem:[#allocation2 + $0x4] sm:$0xf]
      %736 = vrot.lane.b32.xlu0 %v732, 116
      %v737 = vpop.permute.xlu0 %736
      %738 = vrot.lane.b32.xlu0 %v733, 116
      %v739 = vpop.permute.xlu0 %738
      %742 = vst.msk [vmem:[#allocation3 + $0x28] sm:$0xf] %vm435, %v737
      %743 = vst.msk [vmem:[#allocation3 + $0x2c] sm:$0xf] %vm435, %v739
      %v744 = vld [vmem:[#allocation2] sm:$0xf]
      %v745 = vld [vmem:[#allocation2 + $0x4] sm:$0xf]
      %748 = vrot.lane.b32.xlu0 %v744, 108
      %v749 = vpop.permute.xlu0 %748
      %750 = vrot.lane.b32.xlu0 %v745, 108
      %v751 = vpop.permute.xlu0 %750
      %754 = vst.msk [vmem:[#allocation3 + $0x30] sm:$0xf] %vm435, %v749
      %755 = vst.msk [vmem:[#allocation3 + $0x34] sm:$0xf] %vm435, %v751
      %v756 = vld [vmem:[#allocation2] sm:$0xf]
      %v757 = vld [vmem:[#allocation2 + $0x4] sm:$0xf]
      %760 = vrot.lane.b32.xlu0 %v756, 107
      %v761 = vpop.permute.xlu0 %760
      %762 = vrot.lane.b32.xlu0 %v757, 107
      %v763 = vpop.permute.xlu0 %762
      %766 = vst.msk [vmem:[#allocation3 + $0x38] sm:$0xf] %vm435, %v761
      %767 = vst.msk [vmem:[#allocation3 + $0x3c] sm:$0xf] %vm435, %v763
      %v768 = vld [vmem:[#allocation2] sm:$0xf]
      %v769 = vld [vmem:[#allocation2 + $0x4] sm:$0xf]
      %772 = vrot.lane.b32.xlu0 %v768, 106
      %v773 = vpop.permute.xlu0 %772
      %774 = vrot.lane.b32.xlu0 %v769, 106
      %v775 = vpop.permute.xlu0 %774
      %778 = vst.msk [vmem:[#allocation3 + $0x40] sm:$0xf] %vm435, %v773
      %779 = vst.msk [vmem:[#allocation3 + $0x44] sm:$0xf] %vm435, %v775
      %v780 = vld [vmem:[%s4] sm:$0xff]
      %v781 = vld [vmem:[%s4 + $0x8] sm:$0x33]
      %v782 = vld [vmem:[#allocation3] sm:$0xf]
      %v783 = vld [vmem:[#allocation3 + $0x4] sm:$0xf]
      %v784 = vld [vmem:[#allocation3 + $0x8] sm:$0xf]
      %v785 = vld [vmem:[#allocation3 + $0xc] sm:$0xf]
      %v786 = vld [vmem:[#allocation3 + $0x10] sm:$0xf]
      %v787 = vld [vmem:[#allocation3 + $0x14] sm:$0xf]
      %v788 = vld [vmem:[#allocation3 + $0x18] sm:$0xf]
      %v789 = vld [vmem:[#allocation3 + $0x1c] sm:$0xf]
      %v790 = vld [vmem:[#allocation3 + $0x20] sm:$0xf]
      %v791 = vld [vmem:[#allocation3 + $0x24] sm:$0xf]
      %v792 = vld [vmem:[#allocation3 + $0x28] sm:$0xf]
      %v793 = vld [vmem:[#allocation3 + $0x2c] sm:$0xf]
      %v794 = vld [vmem:[#allocation3 + $0x30] sm:$0xf]
      %v795 = vld [vmem:[#allocation3 + $0x34] sm:$0xf]
      %v796 = vld [vmem:[#allocation3 + $0x38] sm:$0xf]
      %v797 = vld [vmem:[#allocation3 + $0x3c] sm:$0xf]
      %v798 = vld [vmem:[#allocation3 + $0x40] sm:$0xf]
      %v799 = vld [vmem:[#allocation3 + $0x44] sm:$0xf]
      %v800 = vld [vmem:[%s5] sm:$0xff]
      %v801 = vld [vmem:[%s5 + $0x8] sm:$0xf]
      %803 = vset.pattern.permute.xlu0 0
      %804 = vperm.xlu0 %803, %v800
      %v805 = vpop.permute.xlu0 %804
      %808 = vset.pattern.permute.xlu0 0
      %809 = vperm.xlu0 %808, %v801
      %v810 = vpop.permute.xlu0 %809
      %v814 = vunpack.c.l.b16 %v780
      %v815 = vunpack.c.h.b16 %v780
      %v816 = vunpack.c.l.b16 %v781
      %v817 = vunpack.c.h.b16 %v781
      %v818 = vpack.c.b16 %v816, %v814
      %v819 = vpack.c.b16 %v817, %v815
      %v839 = vunpack.c.l.b16 %v782
      %v840 = vunpack.c.l.b16 %v783
      %v841 = vunpack.c.l.b16 %v784
      %v842 = vunpack.c.l.b16 %v785
      %v843 = vunpack.c.l.b16 %v786
      %v844 = vunpack.c.l.b16 %v787
      %v845 = vunpack.c.l.b16 %v788
      %v846 = vunpack.c.l.b16 %v789
      %v847 = vunpack.c.l.b16 %v790
      %v848 = vunpack.c.l.b16 %v791
      %v849 = vunpack.c.l.b16 %v792
      %v850 = vunpack.c.l.b16 %v793
      %v851 = vunpack.c.l.b16 %v794
      %v852 = vunpack.c.l.b16 %v795
      %v853 = vunpack.c.l.b16 %v796
      %v854 = vunpack.c.l.b16 %v797
      %v855 = vunpack.c.l.b16 %v798
      %v856 = vunpack.c.l.b16 %v799
      %v857 = vpack.c.b16 %v840, %v839
      %v858 = vpack.c.b16 %v842, %v841
      %v859 = vpack.c.b16 %v844, %v843
      %v860 = vpack.c.b16 %v846, %v845
      %v861 = vpack.c.b16 %v848, %v847
      %v862 = vpack.c.b16 %v850, %v849
      %v863 = vpack.c.b16 %v852, %v851
      %v864 = vpack.c.b16 %v854, %v853
      %v865 = vpack.c.b16 %v856, %v855
      %v876 = vsel %vm629, %v819, 0
      %878 = vmatpush.bf16.msra.mxu0 %v864
      %879 = vmatpush.bf16.msra.mxu0 %v863
      %880 = vmatpush.bf16.msra.mxu0 %v862
      %881 = vmatpush.bf16.msra.mxu0 %v861
      %882 = vmatpush.bf16.msra.mxu0 %v860
      %883 = vmatpush.bf16.msra.mxu0 %v859
      %884 = vmatpush.bf16.msra.mxu0 %v858
      %885 = vmatpush.bf16.msra.mxu0 %v857
      %886 = vmatmul.bf16.gmra.mxu0 %v818
      %v887 = vpop.f32.mrf.mxu0
      %v888 = vadd.f32 %v805, %v887
      %v889 = vpop.f32.mrf.mxu0
      %v890 = vadd.f32 %v810, %v889
      %891 = vdwg.mxu0
      %892 = vmatpush.bf16.msra.mxu0 0
      %893 = vmatpush.bf16.msra.mxu0 0
      %894 = vmatpush.bf16.msra.mxu0 0
      %895 = vmatpush.bf16.msra.mxu0 0
      %896 = vmatpush.bf16.msra.mxu0 0
      %897 = vmatpush.bf16.msra.mxu0 0
      %898 = vmatpush.bf16.msra.mxu0 0
      %899 = vmatpush.bf16.msra.mxu0 %v865
      %900 = vmatmul.bf16.gmra.mxu0 %v876
      %v901 = vpop.f32.mrf.mxu0
      %v902 = vadd.f32 %v888, %v901
      %v903 = vpop.f32.mrf.mxu0
      %v904 = vadd.f32 %v890, %v903
      %905 = vdwg.mxu0
      %v906 = vadd.f32 %v902, %v417
      %v907 = vadd.f32 %v904, %v418
      %v908 = vmul.f32 %v906, %v664
      %v909 = vmul.f32 %v907, %v664
      %v910 = vpack.c.bf16 %v908, %v908
      %v911 = vpack.c.bf16 %v909, %v909
      %914 = vrot.lane.b32.xlu0 %v910, 11
      %v915 = vpop.permute.xlu0 %914
      %916 = vrot.lane.b32.xlu0 %v911, 11
      %v917 = vpop.permute.xlu0 %916
      %920 = vst.msk [vmem:[#allocation2] sm:$0xf] %vm429, %v915
      %921 = vst.msk [vmem:[#allocation2 + $0x4] sm:$0x3] %vm431, %v917
      %v922 = vld [vmem:[#allocation2] sm:$0xf]
      %v923 = vld [vmem:[#allocation2 + $0x4] sm:$0xf]
      %924 = vst.msk [vmem:[#allocation3] sm:$0xf] %vm435, %v922
      %925 = vst.msk [vmem:[#allocation3 + $0x4] sm:$0xf] %vm435, %v923
      %v926 = vld [vmem:[#allocation2] sm:$0xf]
      %v927 = vld [vmem:[#allocation2 + $0x4] sm:$0xf]
      %930 = vrot.lane.b32.xlu0 %v926, 127
      %v931 = vpop.permute.xlu0 %930
      %932 = vrot.lane.b32.xlu0 %v927, 127
      %v933 = vpop.permute.xlu0 %932
      %936 = vst.msk [vmem:[#allocation3 + $0x8] sm:$0xf] %vm435, %v931
      %937 = vst.msk [vmem:[#allocation3 + $0xc] sm:$0xf] %vm435, %v933
      %v938 = vld [vmem:[#allocation2] sm:$0xf]
      %v939 = vld [vmem:[#allocation2 + $0x4] sm:$0xf]
      %942 = vrot.lane.b32.xlu0 %v938, 126
      %v943 = vpop.permute.xlu0 %942
      %944 = vrot.lane.b32.xlu0 %v939, 126
      %v945 = vpop.permute.xlu0 %944
      %948 = vst.msk [vmem:[#allocation3 + $0x10] sm:$0xf] %vm435, %v943
      %949 = vst.msk [vmem:[#allocation3 + $0x14] sm:$0xf] %vm435, %v945
      %v950 = vld [vmem:[#allocation2] sm:$0xf]
      %v951 = vld [vmem:[#allocation2 + $0x4] sm:$0xf]
      %954 = vrot.lane.b32.xlu0 %v950, 118
      %v955 = vpop.permute.xlu0 %954
      %956 = vrot.lane.b32.xlu0 %v951, 118
      %v957 = vpop.permute.xlu0 %956
      %960 = vst.msk [vmem:[#allocation3 + $0x18] sm:$0xf] %vm435, %v955
      %961 = vst.msk [vmem:[#allocation3 + $0x1c] sm:$0xf] %vm435, %v957
      %v962 = vld [vmem:[#allocation2] sm:$0xf]
      %v963 = vld [vmem:[#allocation2 + $0x4] sm:$0xf]
      %966 = vrot.lane.b32.xlu0 %v962, 117
      %v967 = vpop.permute.xlu0 %966
      %968 = vrot.lane.b32.xlu0 %v963, 117
      %v969 = vpop.permute.xlu0 %968
      %972 = vst.msk [vmem:[#allocation3 + $0x20] sm:$0xf] %vm435, %v967
      %973 = vst.msk [vmem:[#allocation3 + $0x24] sm:$0xf] %vm435, %v969
      %v974 = vld [vmem:[#allocation2] sm:$0xf]
      %v975 = vld [vmem:[#allocation2 + $0x4] sm:$0xf]
      %978 = vrot.lane.b32.xlu0 %v974, 116
      %v979 = vpop.permute.xlu0 %978
      %980 = vrot.lane.b32.xlu0 %v975, 116
      %v981 = vpop.permute.xlu0 %980
      %984 = vst.msk [vmem:[#allocation3 + $0x28] sm:$0xf] %vm435, %v979
      %985 = vst.msk [vmem:[#allocation3 + $0x2c] sm:$0xf] %vm435, %v981
      %v986 = vld [vmem:[#allocation2] sm:$0xf]
      %v987 = vld [vmem:[#allocation2 + $0x4] sm:$0xf]
      %990 = vrot.lane.b32.xlu0 %v986, 108
      %v991 = vpop.permute.xlu0 %990
      %992 = vrot.lane.b32.xlu0 %v987, 108
      %v993 = vpop.permute.xlu0 %992
      %996 = vst.msk [vmem:[#allocation3 + $0x30] sm:$0xf] %vm435, %v991
      %997 = vst.msk [vmem:[#allocation3 + $0x34] sm:$0xf] %vm435, %v993
      %v998 = vld [vmem:[#allocation2] sm:$0xf]
      %v999 = vld [vmem:[#allocation2 + $0x4] sm:$0xf]
      %1002 = vrot.lane.b32.xlu0 %v998, 107
      %v1003 = vpop.permute.xlu0 %1002
      %1004 = vrot.lane.b32.xlu0 %v999, 107
      %v1005 = vpop.permute.xlu0 %1004
      %1008 = vst.msk [vmem:[#allocation3 + $0x38] sm:$0xf] %vm435, %v1003
      %1009 = vst.msk [vmem:[#allocation3 + $0x3c] sm:$0xf] %vm435, %v1005
      %v1010 = vld [vmem:[#allocation2] sm:$0xf]
      %v1011 = vld [vmem:[#allocation2 + $0x4] sm:$0xf]
      %1014 = vrot.lane.b32.xlu0 %v1010, 106
      %v1015 = vpop.permute.xlu0 %1014
      %1016 = vrot.lane.b32.xlu0 %v1011, 106
      %v1017 = vpop.permute.xlu0 %1016
      %1020 = vst.msk [vmem:[#allocation3 + $0x40] sm:$0xf] %vm435, %v1015
      %1021 = vst.msk [vmem:[#allocation3 + $0x44] sm:$0xf] %vm435, %v1017
      %v1022 = vld [vmem:[%s6] sm:$0xff]
      %v1023 = vld [vmem:[%s6 + $0x8] sm:$0x33]
      %v1024 = vld [vmem:[#allocation3] sm:$0xf]
      %v1025 = vld [vmem:[#allocation3 + $0x4] sm:$0xf]
      %v1026 = vld [vmem:[#allocation3 + $0x8] sm:$0xf]
      %v1027 = vld [vmem:[#allocation3 + $0xc] sm:$0xf]
      %v1028 = vld [vmem:[#allocation3 + $0x10] sm:$0xf]
      %v1029 = vld [vmem:[#allocation3 + $0x14] sm:$0xf]
      %v1030 = vld [vmem:[#allocation3 + $0x18] sm:$0xf]
      %v1031 = vld [vmem:[#allocation3 + $0x1c] sm:$0xf]
      %v1032 = vld [vmem:[#allocation3 + $0x20] sm:$0xf]
      %v1033 = vld [vmem:[#allocation3 + $0x24] sm:$0xf]
      %v1034 = vld [vmem:[#allocation3 + $0x28] sm:$0xf]
      %v1035 = vld [vmem:[#allocation3 + $0x2c] sm:$0xf]
      %v1036 = vld [vmem:[#allocation3 + $0x30] sm:$0xf]
      %v1037 = vld [vmem:[#allocation3 + $0x34] sm:$0xf]
      %v1038 = vld [vmem:[#allocation3 + $0x38] sm:$0xf]
      %v1039 = vld [vmem:[#allocation3 + $0x3c] sm:$0xf]
      %v1040 = vld [vmem:[#allocation3 + $0x40] sm:$0xf]
      %v1041 = vld [vmem:[#allocation3 + $0x44] sm:$0xf]
      %v1042 = vld [vmem:[%s7] sm:$0xff]
      %v1043 = vld [vmem:[%s7 + $0x8] sm:$0xf]
      %1045 = vset.pattern.permute.xlu0 0
      %1046 = vperm.xlu0 %1045, %v1042
      %v1047 = vpop.permute.xlu0 %1046
      %1050 = vset.pattern.permute.xlu0 0
      %1051 = vperm.xlu0 %1050, %v1043
      %v1052 = vpop.permute.xlu0 %1051
      %v1056 = vunpack.c.l.b16 %v1022
      %v1057 = vunpack.c.h.b16 %v1022
      %v1058 = vunpack.c.l.b16 %v1023
      %v1059 = vunpack.c.h.b16 %v1023
      %v1060 = vpack.c.b16 %v1058, %v1056
      %v1061 = vpack.c.b16 %v1059, %v1057
      %v1081 = vunpack.c.l.b16 %v1024
      %v1082 = vunpack.c.l.b16 %v1025
      %v1083 = vunpack.c.l.b16 %v1026
      %v1084 = vunpack.c.l.b16 %v1027
      %v1085 = vunpack.c.l.b16 %v1028
      %v1086 = vunpack.c.l.b16 %v1029
      %v1087 = vunpack.c.l.b16 %v1030
      %v1088 = vunpack.c.l.b16 %v1031
      %v1089 = vunpack.c.l.b16 %v1032
      %v1090 = vunpack.c.l.b16 %v1033
      %v1091 = vunpack.c.l.b16 %v1034
      %v1092 = vunpack.c.l.b16 %v1035
      %v1093 = vunpack.c.l.b16 %v1036
      %v1094 = vunpack.c.l.b16 %v1037
      %v1095 = vunpack.c.l.b16 %v1038
      %v1096 = vunpack.c.l.b16 %v1039
      %v1097 = vunpack.c.l.b16 %v1040
      %v1098 = vunpack.c.l.b16 %v1041
      %v1099 = vpack.c.b16 %v1082, %v1081
      %v1100 = vpack.c.b16 %v1084, %v1083
      %v1101 = vpack.c.b16 %v1086, %v1085
      %v1102 = vpack.c.b16 %v1088, %v1087
      %v1103 = vpack.c.b16 %v1090, %v1089
      %v1104 = vpack.c.b16 %v1092, %v1091
      %v1105 = vpack.c.b16 %v1094, %v1093
      %v1106 = vpack.c.b16 %v1096, %v1095
      %v1107 = vpack.c.b16 %v1098, %v1097
      %v1118 = vsel %vm629, %v1061, 0
      %1120 = vmatpush.bf16.msra.mxu0 %v1106
      %1121 = vmatpush.bf16.msra.mxu0 %v1105
      %1122 = vmatpush.bf16.msra.mxu0 %v1104
      %1123 = vmatpush.bf16.msra.mxu0 %v1103
      %1124 = vmatpush.bf16.msra.mxu0 %v1102
      %1125 = vmatpush.bf16.msra.mxu0 %v1101
      %1126 = vmatpush.bf16.msra.mxu0 %v1100
      %1127 = vmatpush.bf16.msra.mxu0 %v1099
      %1128 = vmatmul.bf16.gmra.mxu0 %v1060
      %v1129 = vpop.f32.mrf.mxu0
      %v1130 = vadd.f32 %v1047, %v1129
      %v1131 = vpop.f32.mrf.mxu0
      %v1132 = vadd.f32 %v1052, %v1131
      %1133 = vdwg.mxu0
      %1134 = vmatpush.bf16.msra.mxu0 0
      %1135 = vmatpush.bf16.msra.mxu0 0
      %1136 = vmatpush.bf16.msra.mxu0 0
      %1137 = vmatpush.bf16.msra.mxu0 0
      %1138 = vmatpush.bf16.msra.mxu0 0
      %1139 = vmatpush.bf16.msra.mxu0 0
      %1140 = vmatpush.bf16.msra.mxu0 0
      %1141 = vmatpush.bf16.msra.mxu0 %v1107
      %1142 = vmatmul.bf16.gmra.mxu0 %v1118
      %v1143 = vpop.f32.mrf.mxu0
      %v1144 = vadd.f32 %v1130, %v1143
      %v1145 = vpop.f32.mrf.mxu0
      %v1146 = vadd.f32 %v1132, %v1145
      %1147 = vdwg.mxu0
      %v1148 = vmax.f32 %v1144, 0.0
      %v1149 = vmax.f32 %v1146, 0.0
      %v1150 = vmul.f32 %v1148, %v664
      %v1151 = vmul.f32 %v1149, %v664
      %v1152 = vpack.c.bf16 %v1150, %v1150
      %v1153 = vpack.c.bf16 %v1151, %v1151
      %1156 = vrot.lane.b32.xlu0 %v1152, 11
      %v1157 = vpop.permute.xlu0 %1156
      %1158 = vrot.lane.b32.xlu0 %v1153, 11
      %v1159 = vpop.permute.xlu0 %1158
      %1162 = vst.msk [vmem:[#allocation2] sm:$0xf] %vm429, %v1157
      %1163 = vst.msk [vmem:[#allocation2 + $0x4] sm:$0x3] %vm431, %v1159
      %v1164 = vld [vmem:[#allocation2] sm:$0xf]
      %v1165 = vld [vmem:[#allocation2 + $0x4] sm:$0xf]
      %1166 = vst.msk [vmem:[#allocation3] sm:$0xf] %vm435, %v1164
      %1167 = vst.msk [vmem:[#allocation3 + $0x4] sm:$0xf] %vm435, %v1165
      %v1168 = vld [vmem:[#allocation2] sm:$0xf]
      %v1169 = vld [vmem:[#allocation2 + $0x4] sm:$0xf]
      %1172 = vrot.lane.b32.xlu0 %v1168, 127
      %v1173 = vpop.permute.xlu0 %1172
      %1174 = vrot.lane.b32.xlu0 %v1169, 127
      %v1175 = vpop.permute.xlu0 %1174
      %1178 = vst.msk [vmem:[#allocation3 + $0x8] sm:$0xf] %vm435, %v1173
      %1179 = vst.msk [vmem:[#allocation3 + $0xc] sm:$0xf] %vm435, %v1175
      %v1180 = vld [vmem:[#allocation2] sm:$0xf]
      %v1181 = vld [vmem:[#allocation2 + $0x4] sm:$0xf]
      %1184 = vrot.lane.b32.xlu0 %v1180, 126
      %v1185 = vpop.permute.xlu0 %1184
      %1186 = vrot.lane.b32.xlu0 %v1181, 126
      %v1187 = vpop.permute.xlu0 %1186
      %1190 = vst.msk [vmem:[#allocation3 + $0x10] sm:$0xf] %vm435, %v1185
      %1191 = vst.msk [vmem:[#allocation3 + $0x14] sm:$0xf] %vm435, %v1187
      %v1192 = vld [vmem:[#allocation2] sm:$0xf]
      %v1193 = vld [vmem:[#allocation2 + $0x4] sm:$0xf]
      %1196 = vrot.lane.b32.xlu0 %v1192, 118
      %v1197 = vpop.permute.xlu0 %1196
      %1198 = vrot.lane.b32.xlu0 %v1193, 118
      %v1199 = vpop.permute.xlu0 %1198
      %1202 = vst.msk [vmem:[#allocation3 + $0x18] sm:$0xf] %vm435, %v1197
      %1203 = vst.msk [vmem:[#allocation3 + $0x1c] sm:$0xf] %vm435, %v1199
      %v1204 = vld [vmem:[#allocation2] sm:$0xf]
      %v1205 = vld [vmem:[#allocation2 + $0x4] sm:$0xf]
      %1208 = vrot.lane.b32.xlu0 %v1204, 117
      %v1209 = vpop.permute.xlu0 %1208
      %1210 = vrot.lane.b32.xlu0 %v1205, 117
      %v1211 = vpop.permute.xlu0 %1210
      %1214 = vst.msk [vmem:[#allocation3 + $0x20] sm:$0xf] %vm435, %v1209
      %1215 = vst.msk [vmem:[#allocation3 + $0x24] sm:$0xf] %vm435, %v1211
      %v1216 = vld [vmem:[#allocation2] sm:$0xf]
      %v1217 = vld [vmem:[#allocation2 + $0x4] sm:$0xf]
      %1220 = vrot.lane.b32.xlu0 %v1216, 116
      %v1221 = vpop.permute.xlu0 %1220
      %1222 = vrot.lane.b32.xlu0 %v1217, 116
      %v1223 = vpop.permute.xlu0 %1222
      %1226 = vst.msk [vmem:[#allocation3 + $0x28] sm:$0xf] %vm435, %v1221
      %1227 = vst.msk [vmem:[#allocation3 + $0x2c] sm:$0xf] %vm435, %v1223
      %v1228 = vld [vmem:[#allocation2] sm:$0xf]
      %v1229 = vld [vmem:[#allocation2 + $0x4] sm:$0xf]
      %1232 = vrot.lane.b32.xlu0 %v1228, 108
      %v1233 = vpop.permute.xlu0 %1232
      %1234 = vrot.lane.b32.xlu0 %v1229, 108
      %v1235 = vpop.permute.xlu0 %1234
      %1238 = vst.msk [vmem:[#allocation3 + $0x30] sm:$0xf] %vm435, %v1233
      %1239 = vst.msk [vmem:[#allocation3 + $0x34] sm:$0xf] %vm435, %v1235
      %v1240 = vld [vmem:[#allocation2] sm:$0xf]
      %v1241 = vld [vmem:[#allocation2 + $0x4] sm:$0xf]
      %1244 = vrot.lane.b32.xlu0 %v1240, 107
      %v1245 = vpop.permute.xlu0 %1244
      %1246 = vrot.lane.b32.xlu0 %v1241, 107
      %v1247 = vpop.permute.xlu0 %1246
      %1250 = vst.msk [vmem:[#allocation3 + $0x38] sm:$0xf] %vm435, %v1245
      %1251 = vst.msk [vmem:[#allocation3 + $0x3c] sm:$0xf] %vm435, %v1247
      %v1252 = vld [vmem:[#allocation2] sm:$0xf]
      %v1253 = vld [vmem:[#allocation2 + $0x4] sm:$0xf]
      %1256 = vrot.lane.b32.xlu0 %v1252, 106
      %v1257 = vpop.permute.xlu0 %1256
      %1258 = vrot.lane.b32.xlu0 %v1253, 106
      %v1259 = vpop.permute.xlu0 %1258
      %1262 = vst.msk [vmem:[#allocation3 + $0x40] sm:$0xf] %vm435, %v1257
      %1263 = vst.msk [vmem:[#allocation3 + $0x44] sm:$0xf] %vm435, %v1259
      %v1264 = vld [vmem:[%s8] sm:$0xff]
      %v1265 = vld [vmem:[%s8 + $0x8] sm:$0x33]
      %v1266 = vld [vmem:[#allocation3] sm:$0xf]
      %v1267 = vld [vmem:[#allocation3 + $0x4] sm:$0xf]
      %v1268 = vld [vmem:[#allocation3 + $0x8] sm:$0xf]
      %v1269 = vld [vmem:[#allocation3 + $0xc] sm:$0xf]
      %v1270 = vld [vmem:[#allocation3 + $0x10] sm:$0xf]
      %v1271 = vld [vmem:[#allocation3 + $0x14] sm:$0xf]
      %v1272 = vld [vmem:[#allocation3 + $0x18] sm:$0xf]
      %v1273 = vld [vmem:[#allocation3 + $0x1c] sm:$0xf]
      %v1274 = vld [vmem:[#allocation3 + $0x20] sm:$0xf]
      %v1275 = vld [vmem:[#allocation3 + $0x24] sm:$0xf]
      %v1276 = vld [vmem:[#allocation3 + $0x28] sm:$0xf]
      %v1277 = vld [vmem:[#allocation3 + $0x2c] sm:$0xf]
      %v1278 = vld [vmem:[#allocation3 + $0x30] sm:$0xf]
      %v1279 = vld [vmem:[#allocation3 + $0x34] sm:$0xf]
      %v1280 = vld [vmem:[#allocation3 + $0x38] sm:$0xf]
      %v1281 = vld [vmem:[#allocation3 + $0x3c] sm:$0xf]
      %v1282 = vld [vmem:[#allocation3 + $0x40] sm:$0xf]
      %v1283 = vld [vmem:[#allocation3 + $0x44] sm:$0xf]
      %v1284 = vld [vmem:[%s9] sm:$0xff]
      %v1285 = vld [vmem:[%s9 + $0x8] sm:$0xf]
      %1287 = vset.pattern.permute.xlu0 0
      %1288 = vperm.xlu0 %1287, %v1284
      %v1289 = vpop.permute.xlu0 %1288
      %1292 = vset.pattern.permute.xlu0 0
      %1293 = vperm.xlu0 %1292, %v1285
      %v1294 = vpop.permute.xlu0 %1293
      %v1298 = vunpack.c.l.b16 %v1264
      %v1299 = vunpack.c.h.b16 %v1264
      %v1300 = vunpack.c.l.b16 %v1265
      %v1301 = vunpack.c.h.b16 %v1265
      %v1302 = vpack.c.b16 %v1300, %v1298
      %v1303 = vpack.c.b16 %v1301, %v1299
      %v1323 = vunpack.c.l.b16 %v1266
      %v1324 = vunpack.c.l.b16 %v1267
      %v1325 = vunpack.c.l.b16 %v1268
      %v1326 = vunpack.c.l.b16 %v1269
      %v1327 = vunpack.c.l.b16 %v1270
      %v1328 = vunpack.c.l.b16 %v1271
      %v1329 = vunpack.c.l.b16 %v1272
      %v1330 = vunpack.c.l.b16 %v1273
      %v1331 = vunpack.c.l.b16 %v1274
      %v1332 = vunpack.c.l.b16 %v1275
      %v1333 = vunpack.c.l.b16 %v1276
      %v1334 = vunpack.c.l.b16 %v1277
      %v1335 = vunpack.c.l.b16 %v1278
      %v1336 = vunpack.c.l.b16 %v1279
      %v1337 = vunpack.c.l.b16 %v1280
      %v1338 = vunpack.c.l.b16 %v1281
      %v1339 = vunpack.c.l.b16 %v1282
      %v1340 = vunpack.c.l.b16 %v1283
      %v1341 = vpack.c.b16 %v1324, %v1323
      %v1342 = vpack.c.b16 %v1326, %v1325
      %v1343 = vpack.c.b16 %v1328, %v1327
      %v1344 = vpack.c.b16 %v1330, %v1329
      %v1345 = vpack.c.b16 %v1332, %v1331
      %v1346 = vpack.c.b16 %v1334, %v1333
      %v1347 = vpack.c.b16 %v1336, %v1335
      %v1348 = vpack.c.b16 %v1338, %v1337
      %v1349 = vpack.c.b16 %v1340, %v1339
      %v1360 = vsel %vm629, %v1303, 0
      %1362 = vmatpush.bf16.msra.mxu0 %v1348
      %1363 = vmatpush.bf16.msra.mxu0 %v1347
      %1364 = vmatpush.bf16.msra.mxu0 %v1346
      %1365 = vmatpush.bf16.msra.mxu0 %v1345
      %1366 = vmatpush.bf16.msra.mxu0 %v1344
      %1367 = vmatpush.bf16.msra.mxu0 %v1343
      %1368 = vmatpush.bf16.msra.mxu0 %v1342
      %1369 = vmatpush.bf16.msra.mxu0 %v1341
      %1370 = vmatmul.bf16.gmra.mxu0 %v1302
      %v1371 = vpop.f32.mrf.mxu0
      %v1372 = vadd.f32 %v1289, %v1371
      %v1373 = vpop.f32.mrf.mxu0
      %v1374 = vadd.f32 %v1294, %v1373
      %1375 = vdwg.mxu0
      %1376 = vmatpush.bf16.msra.mxu0 0
      %1377 = vmatpush.bf16.msra.mxu0 0
      %1378 = vmatpush.bf16.msra.mxu0 0
      %1379 = vmatpush.bf16.msra.mxu0 0
      %1380 = vmatpush.bf16.msra.mxu0 0
      %1381 = vmatpush.bf16.msra.mxu0 0
      %1382 = vmatpush.bf16.msra.mxu0 0
      %1383 = vmatpush.bf16.msra.mxu0 %v1349
      %1384 = vmatmul.bf16.gmra.mxu0 %v1360
      %v1385 = vpop.f32.mrf.mxu0
      %v1386 = vadd.f32 %v1372, %v1385
      %v1387 = vpop.f32.mrf.mxu0
      %v1388 = vadd.f32 %v1374, %v1387
      %1389 = vdwg.mxu0
      %v1390 = vadd.f32 %v1386, %v906
      %v1391 = vadd.f32 %v1388, %v907
      %v1392 = vmul.f32 %v1390, %v664
      %v1393 = vmul.f32 %v1391, %v664
      %v1394 = vpack.c.bf16 %v1392, %v1392
      %v1395 = vpack.c.bf16 %v1393, %v1393
      %1398 = vrot.lane.b32.xlu0 %v1394, 11
      %v1399 = vpop.permute.xlu0 %1398
      %1400 = vrot.lane.b32.xlu0 %v1395, 11
      %v1401 = vpop.permute.xlu0 %1400
      %1404 = vst.msk [vmem:[#allocation2] sm:$0xf] %vm429, %v1399
      %1405 = vst.msk [vmem:[#allocation2 + $0x4] sm:$0x3] %vm431, %v1401
      %v1406 = vld [vmem:[#allocation2] sm:$0xf]
      %v1407 = vld [vmem:[#allocation2 + $0x4] sm:$0xf]
      %1408 = vst.msk [vmem:[#allocation3] sm:$0xf] %vm435, %v1406
      %1409 = vst.msk [vmem:[#allocation3 + $0x4] sm:$0xf] %vm435, %v1407
      %v1410 = vld [vmem:[#allocation2] sm:$0xf]
      %v1411 = vld [vmem:[#allocation2 + $0x4] sm:$0xf]
      %1414 = vrot.lane.b32.xlu0 %v1410, 127
      %v1415 = vpop.permute.xlu0 %1414
      %1416 = vrot.lane.b32.xlu0 %v1411, 127
      %v1417 = vpop.permute.xlu0 %1416
      %1420 = vst.msk [vmem:[#allocation3 + $0x8] sm:$0xf] %vm435, %v1415
      %1421 = vst.msk [vmem:[#allocation3 + $0xc] sm:$0xf] %vm435, %v1417
      %v1422 = vld [vmem:[#allocation2] sm:$0xf]
      %v1423 = vld [vmem:[#allocation2 + $0x4] sm:$0xf]
      %1426 = vrot.lane.b32.xlu0 %v1422, 126
      %v1427 = vpop.permute.xlu0 %1426
      %1428 = vrot.lane.b32.xlu0 %v1423, 126
      %v1429 = vpop.permute.xlu0 %1428
      %1432 = vst.msk [vmem:[#allocation3 + $0x10] sm:$0xf] %vm435, %v1427
      %1433 = vst.msk [vmem:[#allocation3 + $0x14] sm:$0xf] %vm435, %v1429
      %v1434 = vld [vmem:[#allocation2] sm:$0xf]
      %v1435 = vld [vmem:[#allocation2 + $0x4] sm:$0xf]
      %1438 = vrot.lane.b32.xlu0 %v1434, 118
      %v1439 = vpop.permute.xlu0 %1438
      %1440 = vrot.lane.b32.xlu0 %v1435, 118
      %v1441 = vpop.permute.xlu0 %1440
      %1444 = vst.msk [vmem:[#allocation3 + $0x18] sm:$0xf] %vm435, %v1439
      %1445 = vst.msk [vmem:[#allocation3 + $0x1c] sm:$0xf] %vm435, %v1441
      %v1446 = vld [vmem:[#allocation2] sm:$0xf]
      %v1447 = vld [vmem:[#allocation2 + $0x4] sm:$0xf]
      %1450 = vrot.lane.b32.xlu0 %v1446, 117
      %v1451 = vpop.permute.xlu0 %1450
      %1452 = vrot.lane.b32.xlu0 %v1447, 117
      %v1453 = vpop.permute.xlu0 %1452
      %1456 = vst.msk [vmem:[#allocation3 + $0x20] sm:$0xf] %vm435, %v1451
      %1457 = vst.msk [vmem:[#allocation3 + $0x24] sm:$0xf] %vm435, %v1453
      %v1458 = vld [vmem:[#allocation2] sm:$0xf]
      %v1459 = vld [vmem:[#allocation2 + $0x4] sm:$0xf]
      %1462 = vrot.lane.b32.xlu0 %v1458, 116
      %v1463 = vpop.permute.xlu0 %1462
      %1464 = vrot.lane.b32.xlu0 %v1459, 116
      %v1465 = vpop.permute.xlu0 %1464
      %1468 = vst.msk [vmem:[#allocation3 + $0x28] sm:$0xf] %vm435, %v1463
      %1469 = vst.msk [vmem:[#allocation3 + $0x2c] sm:$0xf] %vm435, %v1465
      %v1470 = vld [vmem:[#allocation2] sm:$0xf]
      %v1471 = vld [vmem:[#allocation2 + $0x4] sm:$0xf]
      %1474 = vrot.lane.b32.xlu0 %v1470, 108
      %v1475 = vpop.permute.xlu0 %1474
      %1476 = vrot.lane.b32.xlu0 %v1471, 108
      %v1477 = vpop.permute.xlu0 %1476
      %1480 = vst.msk [vmem:[#allocation3 + $0x30] sm:$0xf] %vm435, %v1475
      %1481 = vst.msk [vmem:[#allocation3 + $0x34] sm:$0xf] %vm435, %v1477
      %v1482 = vld [vmem:[#allocation2] sm:$0xf]
      %v1483 = vld [vmem:[#allocation2 + $0x4] sm:$0xf]
      %1486 = vrot.lane.b32.xlu0 %v1482, 107
      %v1487 = vpop.permute.xlu0 %1486
      %1488 = vrot.lane.b32.xlu0 %v1483, 107
      %v1489 = vpop.permute.xlu0 %1488
      %1492 = vst.msk [vmem:[#allocation3 + $0x38] sm:$0xf] %vm435, %v1487
      %1493 = vst.msk [vmem:[#allocation3 + $0x3c] sm:$0xf] %vm435, %v1489
      %v1494 = vld [vmem:[#allocation2] sm:$0xf]
      %v1495 = vld [vmem:[#allocation2 + $0x4] sm:$0xf]
      %1498 = vrot.lane.b32.xlu0 %v1494, 106
      %v1499 = vpop.permute.xlu0 %1498
      %1500 = vrot.lane.b32.xlu0 %v1495, 106
      %v1501 = vpop.permute.xlu0 %1500
      %1504 = vst.msk [vmem:[#allocation3 + $0x40] sm:$0xf] %vm435, %v1499
      %1505 = vst.msk [vmem:[#allocation3 + $0x44] sm:$0xf] %vm435, %v1501
      %v1506 = vld [vmem:[%s10] sm:$0xf]
      %v1507 = vld [vmem:[#allocation3] sm:$0xf]
      %v1508 = vld [vmem:[#allocation3 + $0x4] sm:$0xf]
      %v1509 = vld [vmem:[#allocation3 + $0x8] sm:$0xf]
      %v1510 = vld [vmem:[#allocation3 + $0xc] sm:$0xf]
      %v1511 = vld [vmem:[#allocation3 + $0x10] sm:$0xf]
      %v1512 = vld [vmem:[#allocation3 + $0x14] sm:$0xf]
      %v1513 = vld [vmem:[#allocation3 + $0x18] sm:$0xf]
      %v1514 = vld [vmem:[#allocation3 + $0x1c] sm:$0xf]
      %v1515 = vld [vmem:[#allocation3 + $0x20] sm:$0xf]
      %v1516 = vld [vmem:[#allocation3 + $0x24] sm:$0xf]
      %v1517 = vld [vmem:[#allocation3 + $0x28] sm:$0xf]
      %v1518 = vld [vmem:[#allocation3 + $0x2c] sm:$0xf]
      %v1519 = vld [vmem:[#allocation3 + $0x30] sm:$0xf]
      %v1520 = vld [vmem:[#allocation3 + $0x34] sm:$0xf]
      %v1521 = vld [vmem:[#allocation3 + $0x38] sm:$0xf]
      %v1522 = vld [vmem:[#allocation3 + $0x3c] sm:$0xf]
      %v1523 = vld [vmem:[#allocation3 + $0x40] sm:$0xf]
      %v1524 = vld [vmem:[#allocation3 + $0x44] sm:$0xf]
      %v1525 = vld [vmem:[%s11] sm:$0xf]
      %1527 = vset.pattern.permute.xlu0 0
      %1528 = vperm.xlu0 %1527, %v1525
      %v1529 = vpop.permute.xlu0 %1528
      %1532 = vst [vmem:[#allocation1] ss:$4 sm:$0xff] %v1506
      %v1533 = vld.sshfl [vmem:[#allocation1] sm:$0xff pattern:$0x73625140]
      %v1534 = vld.sshfl [vmem:[#allocation1 + $0x8] sm:$0xff pattern:$0x73625140]
      %v1554 = vunpack.c.l.b16 %v1507
      %v1555 = vunpack.c.l.b16 %v1508
      %v1556 = vunpack.c.l.b16 %v1509
      %v1557 = vunpack.c.l.b16 %v1510
      %v1558 = vunpack.c.l.b16 %v1511
      %v1559 = vunpack.c.l.b16 %v1512
      %v1560 = vunpack.c.l.b16 %v1513
      %v1561 = vunpack.c.l.b16 %v1514
      %v1562 = vunpack.c.l.b16 %v1515
      %v1563 = vunpack.c.l.b16 %v1516
      %v1564 = vunpack.c.l.b16 %v1517
      %v1565 = vunpack.c.l.b16 %v1518
      %v1566 = vunpack.c.l.b16 %v1519
      %v1567 = vunpack.c.l.b16 %v1520
      %v1568 = vunpack.c.l.b16 %v1521
      %v1569 = vunpack.c.l.b16 %v1522
      %v1570 = vunpack.c.l.b16 %v1523
      %v1571 = vunpack.c.l.b16 %v1524
      %v1572 = vpack.c.b16 %v1555, %v1554
      %v1573 = vpack.c.b16 %v1557, %v1556
      %v1574 = vpack.c.b16 %v1559, %v1558
      %v1575 = vpack.c.b16 %v1561, %v1560
      %v1576 = vpack.c.b16 %v1563, %v1562
      %v1577 = vpack.c.b16 %v1565, %v1564
      %v1578 = vpack.c.b16 %v1567, %v1566
      %v1579 = vpack.c.b16 %v1569, %v1568
      %v1580 = vpack.c.b16 %v1571, %v1570
      %v1590 = vsel %vm629, %v1534, 0
      %1592 = vmatpush.bf16.msra.mxu0 %v1579
      %1593 = vmatpush.bf16.msra.mxu0 %v1578
      %1594 = vmatpush.bf16.msra.mxu0 %v1577
      %1595 = vmatpush.bf16.msra.mxu0 %v1576
      %1596 = vmatpush.bf16.msra.mxu0 %v1575
      %1597 = vmatpush.bf16.msra.mxu0 %v1574
      %1598 = vmatpush.bf16.msra.mxu0 %v1573
      %1599 = vmatpush.bf16.msra.mxu0 %v1572
      %1600 = vmatmul.bf16.gmra.mxu0 %v1533
      %v1601 = vpop.f32.mrf.mxu0
      %v1602 = vadd.f32 %v1529, %v1601
      %v1603 = vpop.f32.mrf.mxu0
      %1604 = vdwg.mxu0
      %1605 = vmatpush.bf16.msra.mxu0 0
      %1606 = vmatpush.bf16.msra.mxu0 0
      %1607 = vmatpush.bf16.msra.mxu0 0
      %1608 = vmatpush.bf16.msra.mxu0 0
      %1609 = vmatpush.bf16.msra.mxu0 0
      %1610 = vmatpush.bf16.msra.mxu0 0
      %1611 = vmatpush.bf16.msra.mxu0 0
      %1612 = vmatpush.bf16.msra.mxu0 %v1580
      %1613 = vmatmul.bf16.gmra.mxu0 %v1590
      %v1614 = vpop.f32.mrf.mxu0
      %v1615 = vadd.f32 %v1602, %v1614
      %v1616 = vpop.f32.mrf.mxu0
      %1617 = vdwg.mxu0
      %v1618 = vmul.f32 %v1615, %v664
      %v1619 = vsel %vm435, %v1618, 0.0
      %1620 = vadd.xlane.f32.xlu0 %v1619
      %v1621 = vpop.xlane.xlu0 %1620
      %v1622 = vmul.f32 %v1621, 0.015625
      %v1623 = vsub.f32 %v1615, %v1622
      %v1624 = vmul.f32 %v1623, %v664
      %v1625 = vmul.f32 %v1624, %v1624
      %v1626 = vsel %vm435, %v1625, 0.0
      %1627 = vadd.xlane.f32.xlu0 %v1626
      %v1628 = vpop.xlane.xlu0 %1627
      %v1629 = vmul.f32 %v1628, 0.015625
      %v1630 = vadd.f32 %v1629, 1e-05
      %v1631 = vrsqrt.pop %v1630
      %v1632 = vmul.f32 %v1631, %v1630
      %v1633 = vmul.f32 %v1632, %v1631
      %v1634 = vmul.f32 0.5, %v1633
      %v1635 = vsub.f32 1.5, %v1634
      %v1636 = vmul.f32 %v1631, %v1635
      %vm1637 = vweird.f32 %v1630
      %vm1638 = vweird.f32 %v1631
      %vm1639 = vmor %vm1637, %vm1638
      %v1640 = vsel %vm1639, %v1631, %v1636
      %v1641 = vmul.f32 %v1624, %v1640
      %v1642 = vmax.f32 %v1641, 0.0
      %1643 = vst.msk [vmem:[%s411] sm:$0xf] %vm435, %v1642
      %p1644 = scmp.lt.s32.totalorder %s23, 3
      %s1645 = scalar_select %p1644, %s23, 3
      %s1646 = smul.addr %s1645, 4
      %s1647 = scalar_lea.vmem %s12, %s1646
      // Predicated region
      $region69: #{cmp2d_forward.1} parent=67 // pred_check
        %p1648 = pneg %p298
      $region70: #{cmp2d_forward.1} parent=67 // pred_check_branch
        %1650 = sbr.rel (%p1648) target = $region72
      $region71: #{cmp2d_forward.1} parent=67 // pred_region
        _
      $region72: #{cmp2d_forward.1} parent=67 // pred_fallthru
        _
    $region68: #{cmp2d_forward.1} parent=5 // pred_fallthru
      _
    %p1651 = scmp.le.s32.totalorder 2, %s18
    // Predicated region
    $region73: #{cmp2d_forward.1} parent=5 // pred_check
      %p1652 = pneg %p1651
    $region74: #{cmp2d_forward.1} parent=5 // pred_check_branch
      %1654 = sbr.rel (%p1652) target = $region76
    $region75: #{cmp2d_forward.1} parent=5 // pred_region
      %s1655 = ssub.s32 %s18, 2
      // Predicated region
      $region77: #{cmp2d_forward.1} parent=75 // pred_check
        %p1656 = pneg %p304
      $region78: #{cmp2d_forward.1} parent=75 // pred_check_branch
        %1658 = sbr.rel (%p1656) target = $region80
      $region79: #{cmp2d_forward.1} parent=75 // pred_region
        %p1659 = scmp.lt.s32.totalorder %s24, 3
        %s1660 = scalar_select %p1659, %s24, 3
        %s1661 = smul.addr %s1660, 4
        %s1662 = scalar_lea.vmem %s12, %s1661
      $region80: #{cmp2d_forward.1} parent=75 // pred_fallthru
        _
    $region76: #{cmp2d_forward.1} parent=5 // pred_fallthru
      _
  $region6: #{cmp2d_forward.1} parent=0 // loop_footer
    %s22 = sadd.s32 1, %s18
  $region7: #{cmp2d_forward.1} parent=0 // loop_footer_branch
    %17 = sbr.rel target = $region3
  $region8: #{cmp2d_forward.1} parent=0 // loop_exit
    _

</llo_original>
